<compile_context>
chip_gen: v5e
topology: v5e:2x2
jax: 0.10.0
libtpu: 0.0.40
codegen_flags: <defaults>
</compile_context>

<pallas_src>
import math

import jax
import jax.numpy as jnp
from jax.experimental import pallas as pl
from jax.experimental.pallas import tpu as pltpu

# -------------------- synthetic small BERT config --------------------
VOCAB = 100          # vocab_size
MAX_POS = 64         # max_position_embeddings
TYPE_VOCAB = 2       # type_vocab_size
H = 32               # bert hidden_size == LSTM input_size
NH = 2               # num_attention_heads
DH = H // NH         # head dim
FF = 64              # intermediate_size
NLAYERS = 2          # num_hidden_layers
LN_EPS = 1e-12       # BERT layer_norm_eps

HL = 16              # LSTM hidden_size
B = 2                # batch
S = 8                # sequence length


# -------------------- in-kernel math helpers --------------------
def _layernorm(x, g, b):
    mu = jnp.mean(x, axis=-1, keepdims=True)
    var = jnp.mean((x - mu) ** 2, axis=-1, keepdims=True)
    return (x - mu) * jax.lax.rsqrt(var + LN_EPS) * g + b


def _gelu_tanh(x):
    # TODO(synk): tanh-approx GELU ("gelu_new"); HF BERT's exact erf-GELU differs at ~1e-3.
    c = math.sqrt(2.0 / math.pi)
    return 0.5 * x * (1.0 + jnp.tanh(c * (x + 0.044715 * x * x * x)))


def _softmax_last(x):
    x = x - jnp.max(x, axis=-1, keepdims=True)
    e = jnp.exp(x)
    return e * pl.reciprocal(jnp.sum(e, axis=-1, keepdims=True), approx=True)


# -------------------- single fused Pallas kernel --------------------
def fused_forward_kernel(x_ref, embln_ref,
                         wqkv_ref, bqkv_ref, wo_ref, wi_ref, bi_ref, wff_ref,
                         vecs_ref, wlstm_ref, blstm_ref, w0_ref, b0_ref,
                         out_ref):
    f32 = jnp.float32

    # ---- embedding LayerNorm over the whole (B*S, H) block ----
    x = x_ref[...]                                           # (B*S, H)
    x = _layernorm(x, embln_ref[0:1, :], embln_ref[1:2, :])

    # ---- encoder layers (static unroll; all weights VMEM-resident) ----
    for l in range(NLAYERS):
        # fused QKV projection: one (B*S, H) @ (H, 3H) matmul; 1/sqrt(DH)
        # is already folded into the Q columns of the weight slab.
        qkv = jnp.dot(x, wqkv_ref[l], preferred_element_type=f32) + bqkv_ref[l]
        q = qkv[:, 0 * H:1 * H]
        k = qkv[:, 1 * H:2 * H]
        v = qkv[:, 2 * H:3 * H]

        # attention scores are inherently per (batch, head); everything is tiny
        ctx_rows = []
        for b in range(B):
            r0 = b * S
            head_ctx = []
            for h in range(NH):
                c0 = h * DH
                qh = q[r0:r0 + S, c0:c0 + DH]                # (S, DH)
                kh = k[r0:r0 + S, c0:c0 + DH]
                vh = v[r0:r0 + S, c0:c0 + DH]
                s = jax.lax.dot_general(qh, kh, (((1,), (1,)), ((), ())),
                                        preferred_element_type=f32)  # (S, S)
                p = _softmax_last(s)
                head_ctx.append(jnp.dot(p, vh, preferred_element_type=f32))
            ctx_rows.append(jnp.concatenate(head_ctx, axis=1))       # (S, H)
        ctx = jnp.concatenate(ctx_rows, axis=0)                      # (B*S, H)

        vv = vecs_ref[l]                                     # (6, H) packed vectors
        bo, bff = vv[0:1, :], vv[1:2, :]
        ln1g, ln1b = vv[2:3, :], vv[3:4, :]
        ln2g, ln2b = vv[4:5, :], vv[5:6, :]

        # attention output projection: one (B*S, H) @ (H, H) matmul
        attn = jnp.dot(ctx, wo_ref[l], preferred_element_type=f32) + bo
        x1 = _layernorm(x + attn, ln1g, ln1b)

        # feed-forward
        ff = _gelu_tanh(jnp.dot(x1, wi_ref[l], preferred_element_type=f32)
                        + bi_ref[l])
        ff = jnp.dot(ff, wff_ref[l], preferred_element_type=f32) + bff
        x = _layernorm(x1 + ff, ln2g, ln2b)

    # ---- CLS token -> 1-step bidirectional LSTM (h0=c0=0) -> fc0 ----
    cls = jnp.concatenate([x[b * S:b * S + 1, :] for b in range(B)], axis=0)  # (B, H)

    # all i/g/o gates for both directions in ONE (B, H) @ (H, 6*HL) matmul;
    # W_hh@h0 and f*c0 vanish exactly because h0 = c0 = 0.
    gates = jnp.dot(cls, wlstm_ref[...], preferred_element_type=f32) + blstm_ref[...]

    def _direction(off):
        i = jax.nn.sigmoid(gates[:, off:off + HL])
        g = jnp.tanh(gates[:, off + HL:off + 2 * HL])
        o = jax.nn.sigmoid(gates[:, off + 2 * HL:off + 3 * HL])
        return o * jnp.tanh(i * g)                           # (B, HL)

    hf = _direction(0)          # forward final hidden  (h_n[0])
    hr = _direction(3 * HL)     # backward final hidden (h_n[1])

    # fc0 over cat(hf, hr): VPU multiply + lane reduction (no N=1 MXU matmul)
    h_cat = jnp.concatenate([hf, hr], axis=1)                # (B, 2*HL)
    y = jnp.sum(h_cat * w0_ref[...], axis=-1, keepdims=True) + b0_ref[...]
    out_ref[...] = y                                         # (B, 1)


# -------------------- pallas_call wrapper --------------------
def bert_for_mt_forward(params, input_ids):
    # BERT embedding gathers are glue in plain JAX; everything after runs in
    # one fused Pallas kernel.
    pos = jnp.arange(S)
    emb = (params["word_emb"][input_ids]
           + params["pos_emb"][pos][None, :, :]
           + params["type_emb"][0][None, None, :])           # (B, S, H)
    x = emb.reshape(B * S, H).astype(jnp.float32)

    args = (x, params["emb_ln"],
            params["w_qkv"], params["b_qkv"], params["w_o"],
            params["w_i"], params["b_i"], params["w_ff"], params["vecs"],
            params["w_lstm"], params["b_lstm"], params["w0"], params["b0"])

    return pl.pallas_call(
        fused_forward_kernel,
        out_shape=jax.ShapeDtypeStruct((B, 1), jnp.float32),
        in_specs=[pl.BlockSpec(memory_space=pltpu.MemorySpace.VMEM)] * len(args),
        out_specs=pl.BlockSpec(memory_space=pltpu.MemorySpace.VMEM),
    )(*args)


# -------------------- deterministic parameter init --------------------
def init_params(key):
    keys = iter(jax.random.split(key, 128))

    def uni(shape, scale=0.05):
        return jax.random.uniform(next(keys), shape, jnp.float32, -scale, scale)

    p = {}
    p["word_emb"] = uni((VOCAB, H))
    p["pos_emb"] = uni((MAX_POS, H))
    p["type_emb"] = uni((TYPE_VOCAB, H))
    p["emb_ln"] = jnp.stack([jnp.ones((H,), jnp.float32),
                             jnp.zeros((H,), jnp.float32)], axis=0)      # (2, H)

    scale = 1.0 / math.sqrt(DH)
    w_qkv, b_qkv, w_o, w_i, b_i, w_ff, vecs = [], [], [], [], [], [], []
    for _ in range(NLAYERS):
        # attention scale folded into the Q weights and bias at init time
        wq = uni((H, H)) * scale
        bq = uni((1, H)) * scale
        wk, bk = uni((H, H)), uni((1, H))
        wv, bv = uni((H, H)), uni((1, H))
        w_qkv.append(jnp.concatenate([wq, wk, wv], axis=1))              # (H, 3H)
        b_qkv.append(jnp.concatenate([bq, bk, bv], axis=1))              # (1, 3H)
        w_o.append(uni((H, H)))                                          # pre-transposed (in, out)
        bo = uni((1, H))
        w_i.append(uni((H, FF)))
        b_i.append(uni((1, FF)))
        w_ff.append(uni((FF, H)))
        bff = uni((1, H))
        ln1g = jnp.ones((1, H), jnp.float32)
        ln1b = jnp.zeros((1, H), jnp.float32)
        ln2g = jnp.ones((1, H), jnp.float32)
        ln2b = jnp.zeros((1, H), jnp.float32)
        # packed per-layer vectors: rows = [b_o, b_ff, ln1g, ln1b, ln2g, ln2b]
        vecs.append(jnp.concatenate([bo, bff, ln1g, ln1b, ln2g, ln2b], axis=0))

    p["w_qkv"] = jnp.stack(w_qkv)     # (NLAYERS, H, 3H)
    p["b_qkv"] = jnp.stack(b_qkv)     # (NLAYERS, 1, 3H)
    p["w_o"] = jnp.stack(w_o)         # (NLAYERS, H, H)
    p["w_i"] = jnp.stack(w_i)         # (NLAYERS, H, FF)
    p["b_i"] = jnp.stack(b_i)         # (NLAYERS, 1, FF)
    p["w_ff"] = jnp.stack(w_ff)       # (NLAYERS, FF, H)
    p["vecs"] = jnp.stack(vecs)       # (NLAYERS, 6, H)

    # Bidirectional 1-layer LSTM, single timestep, h0 = c0 = 0:
    # W_hh @ h0 and f * c0 vanish, so only the i/g/o input gates matter.
    # Both directions packed into one (H, 6*HL) slab:
    #   columns = [i_f | g_f | o_f | i_r | g_r | o_r], each HL wide.
    # b_ih + b_hh folded into a single bias per gate (forward-pass equivalent).
    k = 1.0 / math.sqrt(HL)
    gate_w, gate_b = [], []
    for _ in range(2):                 # forward, reverse direction
        for _g in range(3):            # i, g, o  (forget gate has no effect)
            gate_w.append(uni((H, HL), k))
            gate_b.append(uni((1, HL), k) + uni((1, HL), k))
    p["w_lstm"] = jnp.concatenate(gate_w, axis=1)     # (H, 6*HL)
    p["b_lstm"] = jnp.concatenate(gate_b, axis=1)     # (1, 6*HL)

    # fc0 = Linear(2*HL, 1), xavier_uniform weight; applied in-kernel as a
    # VPU multiply + lane reduction over cat(hf, hr).
    bound = math.sqrt(6.0 / (2 * HL + 1))
    p["w0"] = jax.random.uniform(next(keys), (1, 2 * HL), jnp.float32, -bound, bound)
    p["b0"] = uni((1, 1), 1.0 / math.sqrt(2 * HL))
    return p


if __name__ == "__main__":
    root = jax.random.PRNGKey(0)
    pk, ik = jax.random.split(root)
    params = init_params(pk)
    input_ids = jax.random.randint(ik, (B, S), 0, VOCAB, dtype=jnp.int32)

    out = jax.jit(bert_for_mt_forward)(params, input_ids)
    out = jax.block_until_ready(out)
    assert out.shape == (B, 1) and out.dtype == jnp.float32
    print("KERNEL_OK")
</pallas_src>

<mosaic_0001>
module attributes {stable_mosaic.version = 11 : i64} {
  func.func @fused_forward_kernel(%arg0: memref<16x32xf32, #tpu.memory_space<vmem>>, %arg1: memref<2x32xf32, #tpu.memory_space<vmem>>, %arg2: memref<2x32x96xf32, #tpu.memory_space<vmem>>, %arg3: memref<2x1x96xf32, #tpu.memory_space<vmem>>, %arg4: memref<2x32x32xf32, #tpu.memory_space<vmem>>, %arg5: memref<2x32x64xf32, #tpu.memory_space<vmem>>, %arg6: memref<2x1x64xf32, #tpu.memory_space<vmem>>, %arg7: memref<2x64x32xf32, #tpu.memory_space<vmem>>, %arg8: memref<2x6x32xf32, #tpu.memory_space<vmem>>, %arg9: memref<32x96xf32, #tpu.memory_space<vmem>>, %arg10: memref<1x96xf32, #tpu.memory_space<vmem>>, %arg11: memref<1x32xf32, #tpu.memory_space<vmem>>, %arg12: memref<1x1xf32, #tpu.memory_space<vmem>>, %arg13: memref<2x1xf32, #tpu.memory_space<vmem>>) attributes {dimension_semantics = [], scalar_prefetch = 0 : i64, scratch_operands = 0 : i64, tpu.core_type = #tpu.core_type<tc>} {
    %c0 = arith.constant 0 : index
    %c0_0 = arith.constant 0 : index
    %0 = vector.load %arg0[%c0, %c0_0] : memref<16x32xf32, #tpu.memory_space<vmem>>, vector<16x32xf32>
    %c0_1 = arith.constant 0 : index
    %c0_2 = arith.constant 0 : index
    %1 = vector.load %arg1[%c0_1, %c0_2] : memref<2x32xf32, #tpu.memory_space<vmem>>, vector<1x32xf32>
    %c1 = arith.constant 1 : index
    %c0_3 = arith.constant 0 : index
    %2 = vector.load %arg1[%c1, %c0_3] : memref<2x32xf32, #tpu.memory_space<vmem>>, vector<1x32xf32>
    %cst = arith.constant dense<0.000000e+00> : vector<16xf32>
    %3 = vector.multi_reduction <add>, %0, %cst [1] : vector<16x32xf32> to vector<16xf32>
    %4 = vector.shape_cast %3 : vector<16xf32> to vector<16x1xf32>
    %cst_4 = arith.constant 3.200000e+01 : f32
    %5 = vector.broadcast %cst_4 : f32 to vector<16x1xf32>
    %6 = arith.divf %4, %5 : vector<16x1xf32>
    %7 = vector.broadcast %6 : vector<16x1xf32> to vector<16x32xf32>
    %8 = arith.subf %0, %7 : vector<16x32xf32>
    %9 = arith.mulf %8, %8 : vector<16x32xf32>
    %cst_5 = arith.constant dense<0.000000e+00> : vector<16xf32>
    %10 = vector.multi_reduction <add>, %9, %cst_5 [1] : vector<16x32xf32> to vector<16xf32>
    %11 = vector.shape_cast %10 : vector<16xf32> to vector<16x1xf32>
    %cst_6 = arith.constant 3.200000e+01 : f32
    %12 = vector.broadcast %cst_6 : f32 to vector<16x1xf32>
    %13 = arith.divf %11, %12 : vector<16x1xf32>
    %14 = vector.broadcast %6 : vector<16x1xf32> to vector<16x32xf32>
    %15 = arith.subf %0, %14 : vector<16x32xf32>
    %cst_7 = arith.constant 9.99999996E-13 : f32
    %16 = vector.broadcast %cst_7 : f32 to vector<16x1xf32>
    %17 = arith.addf %13, %16 : vector<16x1xf32>
    %18 = math.rsqrt %17 : vector<16x1xf32>
    %19 = vector.broadcast %18 : vector<16x1xf32> to vector<16x32xf32>
    %20 = arith.mulf %15, %19 : vector<16x32xf32>
    %21 = vector.broadcast %1 : vector<1x32xf32> to vector<16x32xf32>
    %22 = arith.mulf %20, %21 : vector<16x32xf32>
    %23 = vector.broadcast %2 : vector<1x32xf32> to vector<16x32xf32>
    %24 = arith.addf %22, %23 : vector<16x32xf32>
    %c0_8 = arith.constant 0 : index
    %c0_9 = arith.constant 0 : index
    %c0_10 = arith.constant 0 : index
    %25 = vector.load %arg2[%c0_8, %c0_9, %c0_10] : memref<2x32x96xf32, #tpu.memory_space<vmem>>, vector<1x32x96xf32>
    %26 = vector.shape_cast %25 : vector<1x32x96xf32> to vector<32x96xf32>
    %cst_11 = arith.constant dense<0.000000e+00> : vector<16x96xf32>
    %27 = tpu.matmul %24, %26, %cst_11 {dimension_numbers = #tpu.dot_dimension_numbers<[1], [0], [0], [1], [0, 0, 1, 1], [], []>} : vector<16x32xf32>, vector<32x96xf32>, vector<16x96xf32> -> vector<16x96xf32>
    %c0_12 = arith.constant 0 : index
    %c0_13 = arith.constant 0 : index
    %c0_14 = arith.constant 0 : index
    %28 = vector.load %arg3[%c0_12, %c0_13, %c0_14] : memref<2x1x96xf32, #tpu.memory_space<vmem>>, vector<1x1x96xf32>
    %29 = vector.shape_cast %28 : vector<1x1x96xf32> to vector<1x96xf32>
    %30 = vector.broadcast %29 : vector<1x96xf32> to vector<16x96xf32>
    %31 = arith.addf %27, %30 : vector<16x96xf32>
    %32 = vector.extract_strided_slice %31 {offsets = [0, 0], sizes = [16, 32], strides = [1, 1]} : vector<16x96xf32> to vector<16x32xf32>
    %33 = vector.extract_strided_slice %31 {offsets = [0, 32], sizes = [16, 32], strides = [1, 1]} : vector<16x96xf32> to vector<16x32xf32>
    %34 = vector.extract_strided_slice %31 {offsets = [0, 64], sizes = [16, 32], strides = [1, 1]} : vector<16x96xf32> to vector<16x32xf32>
    %35 = vector.extract_strided_slice %32 {offsets = [0, 0], sizes = [8, 16], strides = [1, 1]} : vector<16x32xf32> to vector<8x16xf32>
    %36 = vector.extract_strided_slice %33 {offsets = [0, 0], sizes = [8, 16], strides = [1, 1]} : vector<16x32xf32> to vector<8x16xf32>
    %37 = vector.extract_strided_slice %34 {offsets = [0, 0], sizes = [8, 16], strides = [1, 1]} : vector<16x32xf32> to vector<8x16xf32>
    %cst_15 = arith.constant dense<0.000000e+00> : vector<8x8xf32>
    %38 = tpu.matmul %35, %36, %cst_15 {dimension_numbers = #tpu.dot_dimension_numbers<[1], [1], [0], [0], [0, 0, 1, 0], [], []>} : vector<8x16xf32>, vector<8x16xf32>, vector<8x8xf32> -> vector<8x8xf32>
    %cst_16 = arith.constant dense<0xFF800000> : vector<8xf32>
    %39 = vector.multi_reduction <maximumf>, %38, %cst_16 [1] : vector<8x8xf32> to vector<8xf32>
    %40 = vector.shape_cast %39 : vector<8xf32> to vector<8x1xf32>
    %41 = vector.broadcast %40 : vector<8x1xf32> to vector<8x8xf32>
    %42 = arith.subf %38, %41 : vector<8x8xf32>
    %43 = math.exp %42 : vector<8x8xf32>
    %cst_17 = arith.constant dense<0.000000e+00> : vector<8xf32>
    %44 = vector.multi_reduction <add>, %43, %cst_17 [1] : vector<8x8xf32> to vector<8xf32>
    %45 = vector.shape_cast %44 : vector<8xf32> to vector<8x1xf32>
    %46 = tpu.reciprocal %45 {approx = true} : vector<8x1xf32> -> vector<8x1xf32>
    %47 = vector.broadcast %46 : vector<8x1xf32> to vector<8x8xf32>
    %48 = arith.mulf %43, %47 : vector<8x8xf32>
    %cst_18 = arith.constant dense<0.000000e+00> : vector<8x16xf32>
    %49 = tpu.matmul %48, %37, %cst_18 {dimension_numbers = #tpu.dot_dimension_numbers<[1], [0], [0], [1], [0, 0, 1, 1], [], []>} : vector<8x8xf32>, vector<8x16xf32>, vector<8x16xf32> -> vector<8x16xf32>
    %50 = vector.extract_strided_slice %32 {offsets = [0, 16], sizes = [8, 16], strides = [1, 1]} : vector<16x32xf32> to vector<8x16xf32>
    %51 = vector.extract_strided_slice %33 {offsets = [0, 16], sizes = [8, 16], strides = [1, 1]} : vector<16x32xf32> to vector<8x16xf32>
    %52 = vector.extract_strided_slice %34 {offsets = [0, 16], sizes = [8, 16], strides = [1, 1]} : vector<16x32xf32> to vector<8x16xf32>
    %cst_19 = arith.constant dense<0.000000e+00> : vector<8x8xf32>
    %53 = tpu.matmul %50, %51, %cst_19 {dimension_numbers = #tpu.dot_dimension_numbers<[1], [1], [0], [0], [0, 0, 1, 0], [], []>} : vector<8x16xf32>, vector<8x16xf32>, vector<8x8xf32> -> vector<8x8xf32>
    %cst_20 = arith.constant dense<0xFF800000> : vector<8xf32>
    %54 = vector.multi_reduction <maximumf>, %53, %cst_20 [1] : vector<8x8xf32> to vector<8xf32>
    %55 = vector.shape_cast %54 : vector<8xf32> to vector<8x1xf32>
    %56 = vector.broadcast %55 : vector<8x1xf32> to vector<8x8xf32>
    %57 = arith.subf %53, %56 : vector<8x8xf32>
    %58 = math.exp %57 : vector<8x8xf32>
    %cst_21 = arith.constant dense<0.000000e+00> : vector<8xf32>
    %59 = vector.multi_reduction <add>, %58, %cst_21 [1] : vector<8x8xf32> to vector<8xf32>
    %60 = vector.shape_cast %59 : vector<8xf32> to vector<8x1xf32>
    %61 = tpu.reciprocal %60 {approx = true} : vector<8x1xf32> -> vector<8x1xf32>
    %62 = vector.broadcast %61 : vector<8x1xf32> to vector<8x8xf32>
    %63 = arith.mulf %58, %62 : vector<8x8xf32>
    %cst_22 = arith.constant dense<0.000000e+00> : vector<8x16xf32>
    %64 = tpu.matmul %63, %52, %cst_22 {dimension_numbers = #tpu.dot_dimension_numbers<[1], [0], [0], [1], [0, 0, 1, 1], [], []>} : vector<8x8xf32>, vector<8x16xf32>, vector<8x16xf32> -> vector<8x16xf32>
    %65 = tpu.concatenate %49, %64 in 1 : vector<8x16xf32>, vector<8x16xf32> -> vector<8x32xf32>
    %66 = vector.extract_strided_slice %32 {offsets = [8, 0], sizes = [8, 16], strides = [1, 1]} : vector<16x32xf32> to vector<8x16xf32>
    %67 = vector.extract_strided_slice %33 {offsets = [8, 0], sizes = [8, 16], strides = [1, 1]} : vector<16x32xf32> to vector<8x16xf32>
    %68 = vector.extract_strided_slice %34 {offsets = [8, 0], sizes = [8, 16], strides = [1, 1]} : vector<16x32xf32> to vector<8x16xf32>
    %cst_23 = arith.constant dense<0.000000e+00> : vector<8x8xf32>
    %69 = tpu.matmul %66, %67, %cst_23 {dimension_numbers = #tpu.dot_dimension_numbers<[1], [1], [0], [0], [0, 0, 1, 0], [], []>} : vector<8x16xf32>, vector<8x16xf32>, vector<8x8xf32> -> vector<8x8xf32>
    %cst_24 = arith.constant dense<0xFF800000> : vector<8xf32>
    %70 = vector.multi_reduction <maximumf>, %69, %cst_24 [1] : vector<8x8xf32> to vector<8xf32>
    %71 = vector.shape_cast %70 : vector<8xf32> to vector<8x1xf32>
    %72 = vector.broadcast %71 : vector<8x1xf32> to vector<8x8xf32>
    %73 = arith.subf %69, %72 : vector<8x8xf32>
    %74 = math.exp %73 : vector<8x8xf32>
    %cst_25 = arith.constant dense<0.000000e+00> : vector<8xf32>
    %75 = vector.multi_reduction <add>, %74, %cst_25 [1] : vector<8x8xf32> to vector<8xf32>
    %76 = vector.shape_cast %75 : vector<8xf32> to vector<8x1xf32>
    %77 = tpu.reciprocal %76 {approx = true} : vector<8x1xf32> -> vector<8x1xf32>
    %78 = vector.broadcast %77 : vector<8x1xf32> to vector<8x8xf32>
    %79 = arith.mulf %74, %78 : vector<8x8xf32>
    %cst_26 = arith.constant dense<0.000000e+00> : vector<8x16xf32>
    %80 = tpu.matmul %79, %68, %cst_26 {dimension_numbers = #tpu.dot_dimension_numbers<[1], [0], [0], [1], [0, 0, 1, 1], [], []>} : vector<8x8xf32>, vector<8x16xf32>, vector<8x16xf32> -> vector<8x16xf32>
    %81 = vector.extract_strided_slice %32 {offsets = [8, 16], sizes = [8, 16], strides = [1, 1]} : vector<16x32xf32> to vector<8x16xf32>
    %82 = vector.extract_strided_slice %33 {offsets = [8, 16], sizes = [8, 16], strides = [1, 1]} : vector<16x32xf32> to vector<8x16xf32>
    %83 = vector.extract_strided_slice %34 {offsets = [8, 16], sizes = [8, 16], strides = [1, 1]} : vector<16x32xf32> to vector<8x16xf32>
    %cst_27 = arith.constant dense<0.000000e+00> : vector<8x8xf32>
    %84 = tpu.matmul %81, %82, %cst_27 {dimension_numbers = #tpu.dot_dimension_numbers<[1], [1], [0], [0], [0, 0, 1, 0], [], []>} : vector<8x16xf32>, vector<8x16xf32>, vector<8x8xf32> -> vector<8x8xf32>
    %cst_28 = arith.constant dense<0xFF800000> : vector<8xf32>
    %85 = vector.multi_reduction <maximumf>, %84, %cst_28 [1] : vector<8x8xf32> to vector<8xf32>
    %86 = vector.shape_cast %85 : vector<8xf32> to vector<8x1xf32>
    %87 = vector.broadcast %86 : vector<8x1xf32> to vector<8x8xf32>
    %88 = arith.subf %84, %87 : vector<8x8xf32>
    %89 = math.exp %88 : vector<8x8xf32>
    %cst_29 = arith.constant dense<0.000000e+00> : vector<8xf32>
    %90 = vector.multi_reduction <add>, %89, %cst_29 [1] : vector<8x8xf32> to vector<8xf32>
    %91 = vector.shape_cast %90 : vector<8xf32> to vector<8x1xf32>
    %92 = tpu.reciprocal %91 {approx = true} : vector<8x1xf32> -> vector<8x1xf32>
    %93 = vector.broadcast %92 : vector<8x1xf32> to vector<8x8xf32>
    %94 = arith.mulf %89, %93 : vector<8x8xf32>
    %cst_30 = arith.constant dense<0.000000e+00> : vector<8x16xf32>
    %95 = tpu.matmul %94, %83, %cst_30 {dimension_numbers = #tpu.dot_dimension_numbers<[1], [0], [0], [1], [0, 0, 1, 1], [], []>} : vector<8x8xf32>, vector<8x16xf32>, vector<8x16xf32> -> vector<8x16xf32>
    %96 = tpu.concatenate %80, %95 in 1 : vector<8x16xf32>, vector<8x16xf32> -> vector<8x32xf32>
    %97 = tpu.concatenate %65, %96 in 0 : vector<8x32xf32>, vector<8x32xf32> -> vector<16x32xf32>
    %c0_31 = arith.constant 0 : index
    %c0_32 = arith.constant 0 : index
    %c0_33 = arith.constant 0 : index
    %98 = vector.load %arg8[%c0_31, %c0_32, %c0_33] : memref<2x6x32xf32, #tpu.memory_space<vmem>>, vector<1x6x32xf32>
    %99 = vector.shape_cast %98 : vector<1x6x32xf32> to vector<6x32xf32>
    %100 = vector.extract_strided_slice %99 {offsets = [0, 0], sizes = [1, 32], strides = [1, 1]} : vector<6x32xf32> to vector<1x32xf32>
    %101 = vector.extract_strided_slice %99 {offsets = [1, 0], sizes = [1, 32], strides = [1, 1]} : vector<6x32xf32> to vector<1x32xf32>
    %102 = vector.extract_strided_slice %99 {offsets = [2, 0], sizes = [1, 32], strides = [1, 1]} : vector<6x32xf32> to vector<1x32xf32>
    %103 = vector.extract_strided_slice %99 {offsets = [3, 0], sizes = [1, 32], strides = [1, 1]} : vector<6x32xf32> to vector<1x32xf32>
    %104 = vector.extract_strided_slice %99 {offsets = [4, 0], sizes = [1, 32], strides = [1, 1]} : vector<6x32xf32> to vector<1x32xf32>
    %105 = vector.extract_strided_slice %99 {offsets = [5, 0], sizes = [1, 32], strides = [1, 1]} : vector<6x32xf32> to vector<1x32xf32>
    %c0_34 = arith.constant 0 : index
    %c0_35 = arith.constant 0 : index
    %c0_36 = arith.constant 0 : index
    %106 = vector.load %arg4[%c0_34, %c0_35, %c0_36] : memref<2x32x32xf32, #tpu.memory_space<vmem>>, vector<1x32x32xf32>
    %107 = vector.shape_cast %106 : vector<1x32x32xf32> to vector<32x32xf32>
    %cst_37 = arith.constant dense<0.000000e+00> : vector<16x32xf32>
    %108 = tpu.matmul %97, %107, %cst_37 {dimension_numbers = #tpu.dot_dimension_numbers<[1], [0], [0], [1], [0, 0, 1, 1], [], []>} : vector<16x32xf32>, vector<32x32xf32>, vector<16x32xf32> -> vector<16x32xf32>
    %109 = vector.broadcast %100 : vector<1x32xf32> to vector<16x32xf32>
    %110 = arith.addf %108, %109 : vector<16x32xf32>
    %111 = arith.addf %24, %110 : vector<16x32xf32>
    %cst_38 = arith.constant dense<0.000000e+00> : vector<16xf32>
    %112 = vector.multi_reduction <add>, %111, %cst_38 [1] : vector<16x32xf32> to vector<16xf32>
    %113 = vector.shape_cast %112 : vector<16xf32> to vector<16x1xf32>
    %cst_39 = arith.constant 3.200000e+01 : f32
    %114 = vector.broadcast %cst_39 : f32 to vector<16x1xf32>
    %115 = arith.divf %113, %114 : vector<16x1xf32>
    %116 = vector.broadcast %115 : vector<16x1xf32> to vector<16x32xf32>
    %117 = arith.subf %111, %116 : vector<16x32xf32>
    %118 = arith.mulf %117, %117 : vector<16x32xf32>
    %cst_40 = arith.constant dense<0.000000e+00> : vector<16xf32>
    %119 = vector.multi_reduction <add>, %118, %cst_40 [1] : vector<16x32xf32> to vector<16xf32>
    %120 = vector.shape_cast %119 : vector<16xf32> to vector<16x1xf32>
    %cst_41 = arith.constant 3.200000e+01 : f32
    %121 = vector.broadcast %cst_41 : f32 to vector<16x1xf32>
    %122 = arith.divf %120, %121 : vector<16x1xf32>
    %123 = vector.broadcast %115 : vector<16x1xf32> to vector<16x32xf32>
    %124 = arith.subf %111, %123 : vector<16x32xf32>
    %cst_42 = arith.constant 9.99999996E-13 : f32
    %125 = vector.broadcast %cst_42 : f32 to vector<16x1xf32>
    %126 = arith.addf %122, %125 : vector<16x1xf32>
    %127 = math.rsqrt %126 : vector<16x1xf32>
    %128 = vector.broadcast %127 : vector<16x1xf32> to vector<16x32xf32>
    %129 = arith.mulf %124, %128 : vector<16x32xf32>
    %130 = vector.broadcast %102 : vector<1x32xf32> to vector<16x32xf32>
    %131 = arith.mulf %129, %130 : vector<16x32xf32>
    %132 = vector.broadcast %103 : vector<1x32xf32> to vector<16x32xf32>
    %133 = arith.addf %131, %132 : vector<16x32xf32>
    %c0_43 = arith.constant 0 : index
    %c0_44 = arith.constant 0 : index
    %c0_45 = arith.constant 0 : index
    %134 = vector.load %arg5[%c0_43, %c0_44, %c0_45] : memref<2x32x64xf32, #tpu.memory_space<vmem>>, vector<1x32x64xf32>
    %135 = vector.shape_cast %134 : vector<1x32x64xf32> to vector<32x64xf32>
    %cst_46 = arith.constant dense<0.000000e+00> : vector<16x64xf32>
    %136 = tpu.matmul %133, %135, %cst_46 {dimension_numbers = #tpu.dot_dimension_numbers<[1], [0], [0], [1], [0, 0, 1, 1], [], []>} : vector<16x32xf32>, vector<32x64xf32>, vector<16x64xf32> -> vector<16x64xf32>
    %c0_47 = arith.constant 0 : index
    %c0_48 = arith.constant 0 : index
    %c0_49 = arith.constant 0 : index
    %137 = vector.load %arg6[%c0_47, %c0_48, %c0_49] : memref<2x1x64xf32, #tpu.memory_space<vmem>>, vector<1x1x64xf32>
    %138 = vector.shape_cast %137 : vector<1x1x64xf32> to vector<1x64xf32>
    %139 = vector.broadcast %138 : vector<1x64xf32> to vector<16x64xf32>
    %140 = arith.addf %136, %139 : vector<16x64xf32>
    %cst_50 = arith.constant 5.000000e-01 : f32
    %141 = vector.broadcast %cst_50 : f32 to vector<16x64xf32>
    %142 = arith.mulf %141, %140 : vector<16x64xf32>
    %cst_51 = arith.constant 4.471500e-02 : f32
    %143 = vector.broadcast %cst_51 : f32 to vector<16x64xf32>
    %144 = arith.mulf %143, %140 : vector<16x64xf32>
    %145 = arith.mulf %144, %140 : vector<16x64xf32>
    %146 = arith.mulf %145, %140 : vector<16x64xf32>
    %147 = arith.addf %140, %146 : vector<16x64xf32>
    %cst_52 = arith.constant 0.797884583 : f32
    %148 = vector.broadcast %cst_52 : f32 to vector<16x64xf32>
    %149 = arith.mulf %148, %147 : vector<16x64xf32>
    %150 = math.tanh %149 : vector<16x64xf32>
    %cst_53 = arith.constant 1.000000e+00 : f32
    %151 = vector.broadcast %cst_53 : f32 to vector<16x64xf32>
    %152 = arith.addf %151, %150 : vector<16x64xf32>
    %153 = arith.mulf %142, %152 : vector<16x64xf32>
    %c0_54 = arith.constant 0 : index
    %c0_55 = arith.constant 0 : index
    %c0_56 = arith.constant 0 : index
    %154 = vector.load %arg7[%c0_54, %c0_55, %c0_56] : memref<2x64x32xf32, #tpu.memory_space<vmem>>, vector<1x64x32xf32>
    %155 = vector.shape_cast %154 : vector<1x64x32xf32> to vector<64x32xf32>
    %cst_57 = arith.constant dense<0.000000e+00> : vector<16x32xf32>
    %156 = tpu.matmul %153, %155, %cst_57 {dimension_numbers = #tpu.dot_dimension_numbers<[1], [0], [0], [1], [0, 0, 1, 1], [], []>} : vector<16x64xf32>, vector<64x32xf32>, vector<16x32xf32> -> vector<16x32xf32>
    %157 = vector.broadcast %101 : vector<1x32xf32> to vector<16x32xf32>
    %158 = arith.addf %156, %157 : vector<16x32xf32>
    %159 = arith.addf %133, %158 : vector<16x32xf32>
    %cst_58 = arith.constant dense<0.000000e+00> : vector<16xf32>
    %160 = vector.multi_reduction <add>, %159, %cst_58 [1] : vector<16x32xf32> to vector<16xf32>
    %161 = vector.shape_cast %160 : vector<16xf32> to vector<16x1xf32>
    %cst_59 = arith.constant 3.200000e+01 : f32
    %162 = vector.broadcast %cst_59 : f32 to vector<16x1xf32>
    %163 = arith.divf %161, %162 : vector<16x1xf32>
    %164 = vector.broadcast %163 : vector<16x1xf32> to vector<16x32xf32>
    %165 = arith.subf %159, %164 : vector<16x32xf32>
    %166 = arith.mulf %165, %165 : vector<16x32xf32>
    %cst_60 = arith.constant dense<0.000000e+00> : vector<16xf32>
    %167 = vector.multi_reduction <add>, %166, %cst_60 [1] : vector<16x32xf32> to vector<16xf32>
    %168 = vector.shape_cast %167 : vector<16xf32> to vector<16x1xf32>
    %cst_61 = arith.constant 3.200000e+01 : f32
    %169 = vector.broadcast %cst_61 : f32 to vector<16x1xf32>
    %170 = arith.divf %168, %169 : vector<16x1xf32>
    %171 = vector.broadcast %163 : vector<16x1xf32> to vector<16x32xf32>
    %172 = arith.subf %159, %171 : vector<16x32xf32>
    %cst_62 = arith.constant 9.99999996E-13 : f32
    %173 = vector.broadcast %cst_62 : f32 to vector<16x1xf32>
    %174 = arith.addf %170, %173 : vector<16x1xf32>
    %175 = math.rsqrt %174 : vector<16x1xf32>
    %176 = vector.broadcast %175 : vector<16x1xf32> to vector<16x32xf32>
    %177 = arith.mulf %172, %176 : vector<16x32xf32>
    %178 = vector.broadcast %104 : vector<1x32xf32> to vector<16x32xf32>
    %179 = arith.mulf %177, %178 : vector<16x32xf32>
    %180 = vector.broadcast %105 : vector<1x32xf32> to vector<16x32xf32>
    %181 = arith.addf %179, %180 : vector<16x32xf32>
    %c1_63 = arith.constant 1 : index
    %c0_64 = arith.constant 0 : index
    %c0_65 = arith.constant 0 : index
    %182 = vector.load %arg2[%c1_63, %c0_64, %c0_65] : memref<2x32x96xf32, #tpu.memory_space<vmem>>, vector<1x32x96xf32>
    %183 = vector.shape_cast %182 : vector<1x32x96xf32> to vector<32x96xf32>
    %cst_66 = arith.constant dense<0.000000e+00> : vector<16x96xf32>
    %184 = tpu.matmul %181, %183, %cst_66 {dimension_numbers = #tpu.dot_dimension_numbers<[1], [0], [0], [1], [0, 0, 1, 1], [], []>} : vector<16x32xf32>, vector<32x96xf32>, vector<16x96xf32> -> vector<16x96xf32>
    %c1_67 = arith.constant 1 : index
    %c0_68 = arith.constant 0 : index
    %c0_69 = arith.constant 0 : index
    %185 = vector.load %arg3[%c1_67, %c0_68, %c0_69] : memref<2x1x96xf32, #tpu.memory_space<vmem>>, vector<1x1x96xf32>
    %186 = vector.shape_cast %185 : vector<1x1x96xf32> to vector<1x96xf32>
    %187 = vector.broadcast %186 : vector<1x96xf32> to vector<16x96xf32>
    %188 = arith.addf %184, %187 : vector<16x96xf32>
    %189 = vector.extract_strided_slice %188 {offsets = [0, 0], sizes = [16, 32], strides = [1, 1]} : vector<16x96xf32> to vector<16x32xf32>
    %190 = vector.extract_strided_slice %188 {offsets = [0, 32], sizes = [16, 32], strides = [1, 1]} : vector<16x96xf32> to vector<16x32xf32>
    %191 = vector.extract_strided_slice %188 {offsets = [0, 64], sizes = [16, 32], strides = [1, 1]} : vector<16x96xf32> to vector<16x32xf32>
    %192 = vector.extract_strided_slice %189 {offsets = [0, 0], sizes = [8, 16], strides = [1, 1]} : vector<16x32xf32> to vector<8x16xf32>
    %193 = vector.extract_strided_slice %190 {offsets = [0, 0], sizes = [8, 16], strides = [1, 1]} : vector<16x32xf32> to vector<8x16xf32>
    %194 = vector.extract_strided_slice %191 {offsets = [0, 0], sizes = [8, 16], strides = [1, 1]} : vector<16x32xf32> to vector<8x16xf32>
    %cst_70 = arith.constant dense<0.000000e+00> : vector<8x8xf32>
    %195 = tpu.matmul %192, %193, %cst_70 {dimension_numbers = #tpu.dot_dimension_numbers<[1], [1], [0], [0], [0, 0, 1, 0], [], []>} : vector<8x16xf32>, vector<8x16xf32>, vector<8x8xf32> -> vector<8x8xf32>
    %cst_71 = arith.constant dense<0xFF800000> : vector<8xf32>
    %196 = vector.multi_reduction <maximumf>, %195, %cst_71 [1] : vector<8x8xf32> to vector<8xf32>
    %197 = vector.shape_cast %196 : vector<8xf32> to vector<8x1xf32>
    %198 = vector.broadcast %197 : vector<8x1xf32> to vector<8x8xf32>
    %199 = arith.subf %195, %198 : vector<8x8xf32>
    %200 = math.exp %199 : vector<8x8xf32>
    %cst_72 = arith.constant dense<0.000000e+00> : vector<8xf32>
    %201 = vector.multi_reduction <add>, %200, %cst_72 [1] : vector<8x8xf32> to vector<8xf32>
    %202 = vector.shape_cast %201 : vector<8xf32> to vector<8x1xf32>
    %203 = tpu.reciprocal %202 {approx = true} : vector<8x1xf32> -> vector<8x1xf32>
    %204 = vector.broadcast %203 : vector<8x1xf32> to vector<8x8xf32>
    %205 = arith.mulf %200, %204 : vector<8x8xf32>
    %cst_73 = arith.constant dense<0.000000e+00> : vector<8x16xf32>
    %206 = tpu.matmul %205, %194, %cst_73 {dimension_numbers = #tpu.dot_dimension_numbers<[1], [0], [0], [1], [0, 0, 1, 1], [], []>} : vector<8x8xf32>, vector<8x16xf32>, vector<8x16xf32> -> vector<8x16xf32>
    %207 = vector.extract_strided_slice %189 {offsets = [0, 16], sizes = [8, 16], strides = [1, 1]} : vector<16x32xf32> to vector<8x16xf32>
    %208 = vector.extract_strided_slice %190 {offsets = [0, 16], sizes = [8, 16], strides = [1, 1]} : vector<16x32xf32> to vector<8x16xf32>
    %209 = vector.extract_strided_slice %191 {offsets = [0, 16], sizes = [8, 16], strides = [1, 1]} : vector<16x32xf32> to vector<8x16xf32>
    %cst_74 = arith.constant dense<0.000000e+00> : vector<8x8xf32>
    %210 = tpu.matmul %207, %208, %cst_74 {dimension_numbers = #tpu.dot_dimension_numbers<[1], [1], [0], [0], [0, 0, 1, 0], [], []>} : vector<8x16xf32>, vector<8x16xf32>, vector<8x8xf32> -> vector<8x8xf32>
    %cst_75 = arith.constant dense<0xFF800000> : vector<8xf32>
    %211 = vector.multi_reduction <maximumf>, %210, %cst_75 [1] : vector<8x8xf32> to vector<8xf32>
    %212 = vector.shape_cast %211 : vector<8xf32> to vector<8x1xf32>
    %213 = vector.broadcast %212 : vector<8x1xf32> to vector<8x8xf32>
    %214 = arith.subf %210, %213 : vector<8x8xf32>
    %215 = math.exp %214 : vector<8x8xf32>
    %cst_76 = arith.constant dense<0.000000e+00> : vector<8xf32>
    %216 = vector.multi_reduction <add>, %215, %cst_76 [1] : vector<8x8xf32> to vector<8xf32>
    %217 = vector.shape_cast %216 : vector<8xf32> to vector<8x1xf32>
    %218 = tpu.reciprocal %217 {approx = true} : vector<8x1xf32> -> vector<8x1xf32>
    %219 = vector.broadcast %218 : vector<8x1xf32> to vector<8x8xf32>
    %220 = arith.mulf %215, %219 : vector<8x8xf32>
    %cst_77 = arith.constant dense<0.000000e+00> : vector<8x16xf32>
    %221 = tpu.matmul %220, %209, %cst_77 {dimension_numbers = #tpu.dot_dimension_numbers<[1], [0], [0], [1], [0, 0, 1, 1], [], []>} : vector<8x8xf32>, vector<8x16xf32>, vector<8x16xf32> -> vector<8x16xf32>
    %222 = tpu.concatenate %206, %221 in 1 : vector<8x16xf32>, vector<8x16xf32> -> vector<8x32xf32>
    %223 = vector.extract_strided_slice %189 {offsets = [8, 0], sizes = [8, 16], strides = [1, 1]} : vector<16x32xf32> to vector<8x16xf32>
    %224 = vector.extract_strided_slice %190 {offsets = [8, 0], sizes = [8, 16], strides = [1, 1]} : vector<16x32xf32> to vector<8x16xf32>
    %225 = vector.extract_strided_slice %191 {offsets = [8, 0], sizes = [8, 16], strides = [1, 1]} : vector<16x32xf32> to vector<8x16xf32>
    %cst_78 = arith.constant dense<0.000000e+00> : vector<8x8xf32>
    %226 = tpu.matmul %223, %224, %cst_78 {dimension_numbers = #tpu.dot_dimension_numbers<[1], [1], [0], [0], [0, 0, 1, 0], [], []>} : vector<8x16xf32>, vector<8x16xf32>, vector<8x8xf32> -> vector<8x8xf32>
    %cst_79 = arith.constant dense<0xFF800000> : vector<8xf32>
    %227 = vector.multi_reduction <maximumf>, %226, %cst_79 [1] : vector<8x8xf32> to vector<8xf32>
    %228 = vector.shape_cast %227 : vector<8xf32> to vector<8x1xf32>
    %229 = vector.broadcast %228 : vector<8x1xf32> to vector<8x8xf32>
    %230 = arith.subf %226, %229 : vector<8x8xf32>
    %231 = math.exp %230 : vector<8x8xf32>
    %cst_80 = arith.constant dense<0.000000e+00> : vector<8xf32>
    %232 = vector.multi_reduction <add>, %231, %cst_80 [1] : vector<8x8xf32> to vector<8xf32>
    %233 = vector.shape_cast %232 : vector<8xf32> to vector<8x1xf32>
    %234 = tpu.reciprocal %233 {approx = true} : vector<8x1xf32> -> vector<8x1xf32>
    %235 = vector.broadcast %234 : vector<8x1xf32> to vector<8x8xf32>
    %236 = arith.mulf %231, %235 : vector<8x8xf32>
    %cst_81 = arith.constant dense<0.000000e+00> : vector<8x16xf32>
    %237 = tpu.matmul %236, %225, %cst_81 {dimension_numbers = #tpu.dot_dimension_numbers<[1], [0], [0], [1], [0, 0, 1, 1], [], []>} : vector<8x8xf32>, vector<8x16xf32>, vector<8x16xf32> -> vector<8x16xf32>
    %238 = vector.extract_strided_slice %189 {offsets = [8, 16], sizes = [8, 16], strides = [1, 1]} : vector<16x32xf32> to vector<8x16xf32>
    %239 = vector.extract_strided_slice %190 {offsets = [8, 16], sizes = [8, 16], strides = [1, 1]} : vector<16x32xf32> to vector<8x16xf32>
    %240 = vector.extract_strided_slice %191 {offsets = [8, 16], sizes = [8, 16], strides = [1, 1]} : vector<16x32xf32> to vector<8x16xf32>
    %cst_82 = arith.constant dense<0.000000e+00> : vector<8x8xf32>
    %241 = tpu.matmul %238, %239, %cst_82 {dimension_numbers = #tpu.dot_dimension_numbers<[1], [1], [0], [0], [0, 0, 1, 0], [], []>} : vector<8x16xf32>, vector<8x16xf32>, vector<8x8xf32> -> vector<8x8xf32>
    %cst_83 = arith.constant dense<0xFF800000> : vector<8xf32>
    %242 = vector.multi_reduction <maximumf>, %241, %cst_83 [1] : vector<8x8xf32> to vector<8xf32>
    %243 = vector.shape_cast %242 : vector<8xf32> to vector<8x1xf32>
    %244 = vector.broadcast %243 : vector<8x1xf32> to vector<8x8xf32>
    %245 = arith.subf %241, %244 : vector<8x8xf32>
    %246 = math.exp %245 : vector<8x8xf32>
    %cst_84 = arith.constant dense<0.000000e+00> : vector<8xf32>
    %247 = vector.multi_reduction <add>, %246, %cst_84 [1] : vector<8x8xf32> to vector<8xf32>
    %248 = vector.shape_cast %247 : vector<8xf32> to vector<8x1xf32>
    %249 = tpu.reciprocal %248 {approx = true} : vector<8x1xf32> -> vector<8x1xf32>
    %250 = vector.broadcast %249 : vector<8x1xf32> to vector<8x8xf32>
    %251 = arith.mulf %246, %250 : vector<8x8xf32>
    %cst_85 = arith.constant dense<0.000000e+00> : vector<8x16xf32>
    %252 = tpu.matmul %251, %240, %cst_85 {dimension_numbers = #tpu.dot_dimension_numbers<[1], [0], [0], [1], [0, 0, 1, 1], [], []>} : vector<8x8xf32>, vector<8x16xf32>, vector<8x16xf32> -> vector<8x16xf32>
    %253 = tpu.concatenate %237, %252 in 1 : vector<8x16xf32>, vector<8x16xf32> -> vector<8x32xf32>
    %254 = tpu.concatenate %222, %253 in 0 : vector<8x32xf32>, vector<8x32xf32> -> vector<16x32xf32>
    %c1_86 = arith.constant 1 : index
    %c0_87 = arith.constant 0 : index
    %c0_88 = arith.constant 0 : index
    %255 = vector.load %arg8[%c1_86, %c0_87, %c0_88] : memref<2x6x32xf32, #tpu.memory_space<vmem>>, vector<1x6x32xf32>
    %256 = vector.shape_cast %255 : vector<1x6x32xf32> to vector<6x32xf32>
    %257 = vector.extract_strided_slice %256 {offsets = [0, 0], sizes = [1, 32], strides = [1, 1]} : vector<6x32xf32> to vector<1x32xf32>
    %258 = vector.extract_strided_slice %256 {offsets = [1, 0], sizes = [1, 32], strides = [1, 1]} : vector<6x32xf32> to vector<1x32xf32>
    %259 = vector.extract_strided_slice %256 {offsets = [2, 0], sizes = [1, 32], strides = [1, 1]} : vector<6x32xf32> to vector<1x32xf32>
    %260 = vector.extract_strided_slice %256 {offsets = [3, 0], sizes = [1, 32], strides = [1, 1]} : vector<6x32xf32> to vector<1x32xf32>
    %261 = vector.extract_strided_slice %256 {offsets = [4, 0], sizes = [1, 32], strides = [1, 1]} : vector<6x32xf32> to vector<1x32xf32>
    %262 = vector.extract_strided_slice %256 {offsets = [5, 0], sizes = [1, 32], strides = [1, 1]} : vector<6x32xf32> to vector<1x32xf32>
    %c1_89 = arith.constant 1 : index
    %c0_90 = arith.constant 0 : index
    %c0_91 = arith.constant 0 : index
    %263 = vector.load %arg4[%c1_89, %c0_90, %c0_91] : memref<2x32x32xf32, #tpu.memory_space<vmem>>, vector<1x32x32xf32>
    %264 = vector.shape_cast %263 : vector<1x32x32xf32> to vector<32x32xf32>
    %cst_92 = arith.constant dense<0.000000e+00> : vector<16x32xf32>
    %265 = tpu.matmul %254, %264, %cst_92 {dimension_numbers = #tpu.dot_dimension_numbers<[1], [0], [0], [1], [0, 0, 1, 1], [], []>} : vector<16x32xf32>, vector<32x32xf32>, vector<16x32xf32> -> vector<16x32xf32>
    %266 = vector.broadcast %257 : vector<1x32xf32> to vector<16x32xf32>
    %267 = arith.addf %265, %266 : vector<16x32xf32>
    %268 = arith.addf %181, %267 : vector<16x32xf32>
    %cst_93 = arith.constant dense<0.000000e+00> : vector<16xf32>
    %269 = vector.multi_reduction <add>, %268, %cst_93 [1] : vector<16x32xf32> to vector<16xf32>
    %270 = vector.shape_cast %269 : vector<16xf32> to vector<16x1xf32>
    %cst_94 = arith.constant 3.200000e+01 : f32
    %271 = vector.broadcast %cst_94 : f32 to vector<16x1xf32>
    %272 = arith.divf %270, %271 : vector<16x1xf32>
    %273 = vector.broadcast %272 : vector<16x1xf32> to vector<16x32xf32>
    %274 = arith.subf %268, %273 : vector<16x32xf32>
    %275 = arith.mulf %274, %274 : vector<16x32xf32>
    %cst_95 = arith.constant dense<0.000000e+00> : vector<16xf32>
    %276 = vector.multi_reduction <add>, %275, %cst_95 [1] : vector<16x32xf32> to vector<16xf32>
    %277 = vector.shape_cast %276 : vector<16xf32> to vector<16x1xf32>
    %cst_96 = arith.constant 3.200000e+01 : f32
    %278 = vector.broadcast %cst_96 : f32 to vector<16x1xf32>
    %279 = arith.divf %277, %278 : vector<16x1xf32>
    %280 = vector.broadcast %272 : vector<16x1xf32> to vector<16x32xf32>
    %281 = arith.subf %268, %280 : vector<16x32xf32>
    %cst_97 = arith.constant 9.99999996E-13 : f32
    %282 = vector.broadcast %cst_97 : f32 to vector<16x1xf32>
    %283 = arith.addf %279, %282 : vector<16x1xf32>
    %284 = math.rsqrt %283 : vector<16x1xf32>
    %285 = vector.broadcast %284 : vector<16x1xf32> to vector<16x32xf32>
    %286 = arith.mulf %281, %285 : vector<16x32xf32>
    %287 = vector.broadcast %259 : vector<1x32xf32> to vector<16x32xf32>
    %288 = arith.mulf %286, %287 : vector<16x32xf32>
    %289 = vector.broadcast %260 : vector<1x32xf32> to vector<16x32xf32>
    %290 = arith.addf %288, %289 : vector<16x32xf32>
    %c1_98 = arith.constant 1 : index
    %c0_99 = arith.constant 0 : index
    %c0_100 = arith.constant 0 : index
    %291 = vector.load %arg5[%c1_98, %c0_99, %c0_100] : memref<2x32x64xf32, #tpu.memory_space<vmem>>, vector<1x32x64xf32>
    %292 = vector.shape_cast %291 : vector<1x32x64xf32> to vector<32x64xf32>
    %cst_101 = arith.constant dense<0.000000e+00> : vector<16x64xf32>
    %293 = tpu.matmul %290, %292, %cst_101 {dimension_numbers = #tpu.dot_dimension_numbers<[1], [0], [0], [1], [0, 0, 1, 1], [], []>} : vector<16x32xf32>, vector<32x64xf32>, vector<16x64xf32> -> vector<16x64xf32>
    %c1_102 = arith.constant 1 : index
    %c0_103 = arith.constant 0 : index
    %c0_104 = arith.constant 0 : index
    %294 = vector.load %arg6[%c1_102, %c0_103, %c0_104] : memref<2x1x64xf32, #tpu.memory_space<vmem>>, vector<1x1x64xf32>
    %295 = vector.shape_cast %294 : vector<1x1x64xf32> to vector<1x64xf32>
    %296 = vector.broadcast %295 : vector<1x64xf32> to vector<16x64xf32>
    %297 = arith.addf %293, %296 : vector<16x64xf32>
    %cst_105 = arith.constant 5.000000e-01 : f32
    %298 = vector.broadcast %cst_105 : f32 to vector<16x64xf32>
    %299 = arith.mulf %298, %297 : vector<16x64xf32>
    %cst_106 = arith.constant 4.471500e-02 : f32
    %300 = vector.broadcast %cst_106 : f32 to vector<16x64xf32>
    %301 = arith.mulf %300, %297 : vector<16x64xf32>
    %302 = arith.mulf %301, %297 : vector<16x64xf32>
    %303 = arith.mulf %302, %297 : vector<16x64xf32>
    %304 = arith.addf %297, %303 : vector<16x64xf32>
    %cst_107 = arith.constant 0.797884583 : f32
    %305 = vector.broadcast %cst_107 : f32 to vector<16x64xf32>
    %306 = arith.mulf %305, %304 : vector<16x64xf32>
    %307 = math.tanh %306 : vector<16x64xf32>
    %cst_108 = arith.constant 1.000000e+00 : f32
    %308 = vector.broadcast %cst_108 : f32 to vector<16x64xf32>
    %309 = arith.addf %308, %307 : vector<16x64xf32>
    %310 = arith.mulf %299, %309 : vector<16x64xf32>
    %c1_109 = arith.constant 1 : index
    %c0_110 = arith.constant 0 : index
    %c0_111 = arith.constant 0 : index
    %311 = vector.load %arg7[%c1_109, %c0_110, %c0_111] : memref<2x64x32xf32, #tpu.memory_space<vmem>>, vector<1x64x32xf32>
    %312 = vector.shape_cast %311 : vector<1x64x32xf32> to vector<64x32xf32>
    %cst_112 = arith.constant dense<0.000000e+00> : vector<16x32xf32>
    %313 = tpu.matmul %310, %312, %cst_112 {dimension_numbers = #tpu.dot_dimension_numbers<[1], [0], [0], [1], [0, 0, 1, 1], [], []>} : vector<16x64xf32>, vector<64x32xf32>, vector<16x32xf32> -> vector<16x32xf32>
    %314 = vector.broadcast %258 : vector<1x32xf32> to vector<16x32xf32>
    %315 = arith.addf %313, %314 : vector<16x32xf32>
    %316 = arith.addf %290, %315 : vector<16x32xf32>
    %cst_113 = arith.constant dense<0.000000e+00> : vector<16xf32>
    %317 = vector.multi_reduction <add>, %316, %cst_113 [1] : vector<16x32xf32> to vector<16xf32>
    %318 = vector.shape_cast %317 : vector<16xf32> to vector<16x1xf32>
    %cst_114 = arith.constant 3.200000e+01 : f32
    %319 = vector.broadcast %cst_114 : f32 to vector<16x1xf32>
    %320 = arith.divf %318, %319 : vector<16x1xf32>
    %321 = vector.broadcast %320 : vector<16x1xf32> to vector<16x32xf32>
    %322 = arith.subf %316, %321 : vector<16x32xf32>
    %323 = arith.mulf %322, %322 : vector<16x32xf32>
    %cst_115 = arith.constant dense<0.000000e+00> : vector<16xf32>
    %324 = vector.multi_reduction <add>, %323, %cst_115 [1] : vector<16x32xf32> to vector<16xf32>
    %325 = vector.shape_cast %324 : vector<16xf32> to vector<16x1xf32>
    %cst_116 = arith.constant 3.200000e+01 : f32
    %326 = vector.broadcast %cst_116 : f32 to vector<16x1xf32>
    %327 = arith.divf %325, %326 : vector<16x1xf32>
    %328 = vector.broadcast %320 : vector<16x1xf32> to vector<16x32xf32>
    %329 = arith.subf %316, %328 : vector<16x32xf32>
    %cst_117 = arith.constant 9.99999996E-13 : f32
    %330 = vector.broadcast %cst_117 : f32 to vector<16x1xf32>
    %331 = arith.addf %327, %330 : vector<16x1xf32>
    %332 = math.rsqrt %331 : vector<16x1xf32>
    %333 = vector.broadcast %332 : vector<16x1xf32> to vector<16x32xf32>
    %334 = arith.mulf %329, %333 : vector<16x32xf32>
    %335 = vector.broadcast %261 : vector<1x32xf32> to vector<16x32xf32>
    %336 = arith.mulf %334, %335 : vector<16x32xf32>
    %337 = vector.broadcast %262 : vector<1x32xf32> to vector<16x32xf32>
    %338 = arith.addf %336, %337 : vector<16x32xf32>
    %339 = vector.extract_strided_slice %338 {offsets = [0, 0], sizes = [1, 32], strides = [1, 1]} : vector<16x32xf32> to vector<1x32xf32>
    %340 = vector.extract_strided_slice %338 {offsets = [8, 0], sizes = [1, 32], strides = [1, 1]} : vector<16x32xf32> to vector<1x32xf32>
    %341 = tpu.concatenate %339, %340 in 0 : vector<1x32xf32>, vector<1x32xf32> -> vector<2x32xf32>
    %c0_118 = arith.constant 0 : index
    %c0_119 = arith.constant 0 : index
    %342 = vector.load %arg9[%c0_118, %c0_119] : memref<32x96xf32, #tpu.memory_space<vmem>>, vector<32x96xf32>
    %cst_120 = arith.constant dense<0.000000e+00> : vector<2x96xf32>
    %343 = tpu.matmul %341, %342, %cst_120 {dimension_numbers = #tpu.dot_dimension_numbers<[1], [0], [0], [1], [0, 0, 1, 1], [], []>} : vector<2x32xf32>, vector<32x96xf32>, vector<2x96xf32> -> vector<2x96xf32>
    %c0_121 = arith.constant 0 : index
    %c0_122 = arith.constant 0 : index
    %344 = vector.load %arg10[%c0_121, %c0_122] : memref<1x96xf32, #tpu.memory_space<vmem>>, vector<1x96xf32>
    %345 = vector.broadcast %344 : vector<1x96xf32> to vector<2x96xf32>
    %346 = arith.addf %343, %345 : vector<2x96xf32>
    %347 = vector.extract_strided_slice %346 {offsets = [0, 0], sizes = [2, 16], strides = [1, 1]} : vector<2x96xf32> to vector<2x16xf32>
    %348 = arith.negf %347 : vector<2x16xf32>
    %349 = math.exp %348 : vector<2x16xf32>
    %cst_123 = arith.constant 1.000000e+00 : f32
    %350 = vector.broadcast %cst_123 : f32 to vector<2x16xf32>
    %351 = arith.addf %350, %349 : vector<2x16xf32>
    %352 = arith.divf %350, %351 : vector<2x16xf32>
    %353 = vector.extract_strided_slice %346 {offsets = [0, 16], sizes = [2, 16], strides = [1, 1]} : vector<2x96xf32> to vector<2x16xf32>
    %354 = math.tanh %353 : vector<2x16xf32>
    %355 = vector.extract_strided_slice %346 {offsets = [0, 32], sizes = [2, 16], strides = [1, 1]} : vector<2x96xf32> to vector<2x16xf32>
    %356 = arith.negf %355 : vector<2x16xf32>
    %357 = math.exp %356 : vector<2x16xf32>
    %cst_124 = arith.constant 1.000000e+00 : f32
    %358 = vector.broadcast %cst_124 : f32 to vector<2x16xf32>
    %359 = arith.addf %358, %357 : vector<2x16xf32>
    %360 = arith.divf %358, %359 : vector<2x16xf32>
    %361 = arith.mulf %352, %354 : vector<2x16xf32>
    %362 = math.tanh %361 : vector<2x16xf32>
    %363 = arith.mulf %360, %362 : vector<2x16xf32>
    %364 = vector.extract_strided_slice %346 {offsets = [0, 48], sizes = [2, 16], strides = [1, 1]} : vector<2x96xf32> to vector<2x16xf32>
    %365 = arith.negf %364 : vector<2x16xf32>
    %366 = math.exp %365 : vector<2x16xf32>
    %cst_125 = arith.constant 1.000000e+00 : f32
    %367 = vector.broadcast %cst_125 : f32 to vector<2x16xf32>
    %368 = arith.addf %367, %366 : vector<2x16xf32>
    %369 = arith.divf %367, %368 : vector<2x16xf32>
    %370 = vector.extract_strided_slice %346 {offsets = [0, 64], sizes = [2, 16], strides = [1, 1]} : vector<2x96xf32> to vector<2x16xf32>
    %371 = math.tanh %370 : vector<2x16xf32>
    %372 = vector.extract_strided_slice %346 {offsets = [0, 80], sizes = [2, 16], strides = [1, 1]} : vector<2x96xf32> to vector<2x16xf32>
    %373 = arith.negf %372 : vector<2x16xf32>
    %374 = math.exp %373 : vector<2x16xf32>
    %cst_126 = arith.constant 1.000000e+00 : f32
    %375 = vector.broadcast %cst_126 : f32 to vector<2x16xf32>
    %376 = arith.addf %375, %374 : vector<2x16xf32>
    %377 = arith.divf %375, %376 : vector<2x16xf32>
    %378 = arith.mulf %369, %371 : vector<2x16xf32>
    %379 = math.tanh %378 : vector<2x16xf32>
    %380 = arith.mulf %377, %379 : vector<2x16xf32>
    %381 = tpu.concatenate %363, %380 in 1 : vector<2x16xf32>, vector<2x16xf32> -> vector<2x32xf32>
    %c0_127 = arith.constant 0 : index
    %c0_128 = arith.constant 0 : index
    %382 = vector.load %arg11[%c0_127, %c0_128] : memref<1x32xf32, #tpu.memory_space<vmem>>, vector<1x32xf32>
    %383 = vector.broadcast %382 : vector<1x32xf32> to vector<2x32xf32>
    %384 = arith.mulf %381, %383 : vector<2x32xf32>
    %cst_129 = arith.constant dense<0.000000e+00> : vector<2xf32>
    %385 = vector.multi_reduction <add>, %384, %cst_129 [1] : vector<2x32xf32> to vector<2xf32>
    %386 = vector.shape_cast %385 : vector<2xf32> to vector<2x1xf32>
    %c0_130 = arith.constant 0 : index
    %c0_131 = arith.constant 0 : index
    %387 = vector.load %arg12[%c0_130, %c0_131] : memref<1x1xf32, #tpu.memory_space<vmem>>, vector<1x1xf32>
    %388 = vector.broadcast %387 : vector<1x1xf32> to vector<2x1xf32>
    %389 = arith.addf %386, %388 : vector<2x1xf32>
    %c0_132 = arith.constant 0 : index
    %c0_133 = arith.constant 0 : index
    %390 = vector.load %arg13[%c0_132, %c0_133] : memref<2x1xf32, #tpu.memory_space<vmem>>, vector<2x1xf32>
    tpu.vector_store %arg13[%c0_132, %c0_133], %389 {strides = array<i32>} : memref<2x1xf32, #tpu.memory_space<vmem>>, vector<2x1xf32>,
    return
  }
}

</mosaic_0001>

<llo_original>
// kernel: bert_for_mt_forward.1
$region0: #{bert_for_mt_forward.1}
  #allocation0 [shape = 'u32[]', space=smem, size = 0x4, offset = 0x4, fixed_abs, tag = 'smem constant byte address 0x4 - core index']
  #allocation1 [shape = 'u32[72,128]{1,0:T(1,128)}', space=vmem, size = 0x9000, scoped, tag = 'internal scratch']
  #allocation2 [shape = 'f32[1,1]{1,0:T(1,128)S(1)}', space=vmem, size = 0x200, scoped, tag = 'scoped memory for bert_for_mt_forward.1']
  %s0 = inlined_call_operand.vmem [shape: f32[16,32], index: 0, kind: input, shape index: {}]
  %s1 = inlined_call_operand.vmem [shape: f32[2,32], index: 1, kind: input, shape index: {}]
  %s2 = inlined_call_operand.vmem [shape: f32[2,32,96], index: 2, kind: input, shape index: {}]
  %s3 = inlined_call_operand.vmem [shape: f32[2,1,96], index: 3, kind: input, shape index: {}]
  %s4 = inlined_call_operand.vmem [shape: f32[2,32,32], index: 4, kind: input, shape index: {}]
  %s5 = inlined_call_operand.vmem [shape: f32[2,32,64], index: 5, kind: input, shape index: {}]
  %s6 = inlined_call_operand.vmem [shape: f32[2,1,64], index: 6, kind: input, shape index: {}]
  %s7 = inlined_call_operand.vmem [shape: f32[2,64,32], index: 7, kind: input, shape index: {}]
  %s8 = inlined_call_operand.vmem [shape: f32[2,6,32], index: 8, kind: input, shape index: {}]
  %s9 = inlined_call_operand.vmem [shape: f32[32,96], index: 9, kind: input, shape index: {}]
  %s10 = inlined_call_operand.vmem [shape: f32[1,96], index: 10, kind: input, shape index: {}]
  %s11 = inlined_call_operand.vmem [shape: f32[1,32], index: 11, kind: input, shape index: {}]
  %s12 = inlined_call_operand.<no memory space> [shape: f32[1,1], index: 12, kind: input, shape index: {}]
  %s13 = inlined_call_operand.vmem [shape: f32[2,1], index: 13, kind: output, shape index: {}]
  %s14 = sld [smem:[#allocation0]]
  $region62: #{bert_for_mt_forward.1} parent=0
    _
  %s16 = ssub.s32 1, %s14
  %s17 = scalar_select 0, %s16, %s14
  %v18 = vstv %s12
  %19 = vst [vmem:[#allocation2] sm:$0x1] %v18
  // Predicated region
  $region2: #{bert_for_mt_forward.1} parent=0 // pred_check
    _
  $region3: #{bert_for_mt_forward.1} parent=0 // pred_check_branch
    %21 = sbr.rel (0) target = $region5
  $region4: #{bert_for_mt_forward.1} parent=0 // pred_region
    _
  $region5: #{bert_for_mt_forward.1} parent=0 // pred_fallthru
    _
  // Predicated region
  $region6: #{bert_for_mt_forward.1} parent=0 // pred_check
    _
  $region7: #{bert_for_mt_forward.1} parent=0 // pred_check_branch
    %23 = sbr.rel (0) target = $region9
  $region8: #{bert_for_mt_forward.1} parent=0 // pred_region
    _
  $region9: #{bert_for_mt_forward.1} parent=0 // pred_fallthru
    _
  // Predicated region
  $region10: #{bert_for_mt_forward.1} parent=0 // pred_check
    _
  $region11: #{bert_for_mt_forward.1} parent=0 // pred_check_branch
    %25 = sbr.rel (0) target = $region13
  $region12: #{bert_for_mt_forward.1} parent=0 // pred_region
    _
  $region13: #{bert_for_mt_forward.1} parent=0 // pred_fallthru
    _
  // Predicated region
  $region14: #{bert_for_mt_forward.1} parent=0 // pred_check
    _
  $region15: #{bert_for_mt_forward.1} parent=0 // pred_check_branch
    %27 = sbr.rel (0) target = $region17
  $region16: #{bert_for_mt_forward.1} parent=0 // pred_region
    _
  $region17: #{bert_for_mt_forward.1} parent=0 // pred_fallthru
    _
  // Predicated region
  $region18: #{bert_for_mt_forward.1} parent=0 // pred_check
    _
  $region19: #{bert_for_mt_forward.1} parent=0 // pred_check_branch
    %29 = sbr.rel (0) target = $region21
  $region20: #{bert_for_mt_forward.1} parent=0 // pred_region
    _
  $region21: #{bert_for_mt_forward.1} parent=0 // pred_fallthru
    _
  // Predicated region
  $region22: #{bert_for_mt_forward.1} parent=0 // pred_check
    _
  $region23: #{bert_for_mt_forward.1} parent=0 // pred_check_branch
    %31 = sbr.rel (0) target = $region25
  $region24: #{bert_for_mt_forward.1} parent=0 // pred_region
    _
  $region25: #{bert_for_mt_forward.1} parent=0 // pred_fallthru
    _
  // Predicated region
  $region26: #{bert_for_mt_forward.1} parent=0 // pred_check
    _
  $region27: #{bert_for_mt_forward.1} parent=0 // pred_check_branch
    %33 = sbr.rel (0) target = $region29
  $region28: #{bert_for_mt_forward.1} parent=0 // pred_region
    _
  $region29: #{bert_for_mt_forward.1} parent=0 // pred_fallthru
    _
  // Predicated region
  $region30: #{bert_for_mt_forward.1} parent=0 // pred_check
    _
  $region31: #{bert_for_mt_forward.1} parent=0 // pred_check_branch
    %35 = sbr.rel (0) target = $region33
  $region32: #{bert_for_mt_forward.1} parent=0 // pred_region
    _
  $region33: #{bert_for_mt_forward.1} parent=0 // pred_fallthru
    _
  // Predicated region
  $region34: #{bert_for_mt_forward.1} parent=0 // pred_check
    _
  $region35: #{bert_for_mt_forward.1} parent=0 // pred_check_branch
    %37 = sbr.rel (0) target = $region37
  $region36: #{bert_for_mt_forward.1} parent=0 // pred_region
    _
  $region37: #{bert_for_mt_forward.1} parent=0 // pred_fallthru
    _
  // Predicated region
  $region38: #{bert_for_mt_forward.1} parent=0 // pred_check
    _
  $region39: #{bert_for_mt_forward.1} parent=0 // pred_check_branch
    %39 = sbr.rel (0) target = $region41
  $region40: #{bert_for_mt_forward.1} parent=0 // pred_region
    _
  $region41: #{bert_for_mt_forward.1} parent=0 // pred_fallthru
    _
  // Predicated region
  $region42: #{bert_for_mt_forward.1} parent=0 // pred_check
    _
  $region43: #{bert_for_mt_forward.1} parent=0 // pred_check_branch
    %41 = sbr.rel (0) target = $region45
  $region44: #{bert_for_mt_forward.1} parent=0 // pred_region
    _
  $region45: #{bert_for_mt_forward.1} parent=0 // pred_fallthru
    _
  // Predicated region
  $region46: #{bert_for_mt_forward.1} parent=0 // pred_check
    _
  $region47: #{bert_for_mt_forward.1} parent=0 // pred_check_branch
    %43 = sbr.rel (0) target = $region49
  $region48: #{bert_for_mt_forward.1} parent=0 // pred_region
    _
  $region49: #{bert_for_mt_forward.1} parent=0 // pred_fallthru
    _
  // Predicated region
  $region50: #{bert_for_mt_forward.1} parent=0 // pred_check
    _
  $region51: #{bert_for_mt_forward.1} parent=0 // pred_check_branch
    %45 = sbr.rel (0) target = $region53
  $region52: #{bert_for_mt_forward.1} parent=0 // pred_region
    _
  $region53: #{bert_for_mt_forward.1} parent=0 // pred_fallthru
    _
  %v46 = vld [vmem:[%s0] sm:$0xff]
  %v47 = vld [vmem:[%s0 + $0x8] sm:$0xff]
  %v48 = vld [vmem:[%s1] sm:$0x1]
  %v49 = vld [vmem:[%s1 + $0x1] sm:$0x1]
  %vm50 = vcmask 261120
  %v51 = vsel %vm50, %v46, 0.0
  %52 = vadd.xlane.f32.xlu0 %v51
  %v53 = vpop.xlane.xlu0 %52
  %v54 = vsel %vm50, %v47, 0.0
  %55 = vadd.xlane.f32.xlu0 %v54
  %v56 = vpop.xlane.xlu0 %55
  %v57 = vrcp.pop 32.0
  %v58 = vmul.f32 32.0, %v57
  %v59 = vsub.f32 1.0, %v58
  %v60 = vmul.f32 %v57, %v59
  %v61 = vadd.f32 %v57, %v60
  %vm62 = vweird.f32 %v57
  %v63 = vsel %vm62, %v57, %v61
  %v64 = vmul.f32 %v53, %v63
  %v65 = vmul.f32 %v56, %v63
  %v66 = vsub.f32 %v46, %v64
  %v67 = vsub.f32 %v47, %v65
  %v68 = vmul.f32 %v66, %v66
  %v69 = vmul.f32 %v67, %v67
  %v70 = vsel %vm50, %v68, 0.0
  %71 = vadd.xlane.f32.xlu0 %v70
  %v72 = vpop.xlane.xlu0 %71
  %v73 = vsel %vm50, %v69, 0.0
  %74 = vadd.xlane.f32.xlu0 %v73
  %v75 = vpop.xlane.xlu0 %74
  %v76 = vmul.f32 %v72, %v63
  %v77 = vmul.f32 %v75, %v63
  %v78 = vadd.f32 %v76, 1e-12
  %v79 = vadd.f32 %v77, 1e-12
  %v80 = vrsqrt.pop %v78
  %v81 = vmul.f32 %v80, %v78
  %v82 = vmul.f32 %v81, %v80
  %v83 = vmul.f32 0.5, %v82
  %v84 = vsub.f32 1.5, %v83
  %v85 = vmul.f32 %v80, %v84
  %vm86 = vweird.f32 %v78
  %vm87 = vweird.f32 %v80
  %vm88 = vmor %vm86, %vm87
  %v89 = vsel %vm88, %v80, %v85
  %v90 = vrsqrt.pop %v79
  %v91 = vmul.f32 %v90, %v79
  %v92 = vmul.f32 %v91, %v90
  %v93 = vmul.f32 0.5, %v92
  %v94 = vsub.f32 1.5, %v93
  %v95 = vmul.f32 %v90, %v94
  %vm96 = vweird.f32 %v79
  %vm97 = vweird.f32 %v90
  %vm98 = vmor %vm96, %vm97
  %v99 = vsel %vm98, %v90, %v95
  %v100 = vmul.f32 %v66, %v89
  %v101 = vmul.f32 %v67, %v99
  %v102 = vperm.slane %v48, 0
  %v103 = vmul.f32 %v100, %v102
  %v104 = vmul.f32 %v101, %v102
  %v105 = vperm.slane %v49, 0
  %v106 = vadd.f32 %v103, %v105
  %v107 = vadd.f32 %v104, %v105
  %v108 = vld [vmem:[%s2] sm:$0xff]
  %v109 = vld [vmem:[%s2 + $0x8] sm:$0xff]
  %v110 = vld [vmem:[%s2 + $0x10] sm:$0xff]
  %v111 = vld [vmem:[%s2 + $0x18] sm:$0xff]
  %v112 = vld [vmem:[%s3] sm:$0x1]
  %v114 = vperm.slane %v112, 0
  %v117 = vsel %vm50, %v106, 0
  %v120 = vsel %vm50, %v107, 0
  %122 = vmatpush.msra.mxu0 0.0
  %123 = vmatpush.msra.mxu0 0.0
  %124 = vmatpush.msra.mxu0 0.0
  %125 = vmatpush.msra.mxu0 0.0
  %126 = vmatpush.msra.mxu0 0.0
  %127 = vmatpush.msra.mxu0 0.0
  %128 = vmatpush.msra.mxu0 0.0
  %129 = vmatpush.msra.mxu0 0.0
  %130 = vmatpush.msra.mxu0 0.0
  %131 = vmatpush.msra.mxu0 0.0
  %132 = vmatpush.msra.mxu0 0.0
  %133 = vmatpush.msra.mxu0 0.0
  %134 = vmatpush.msra.mxu0 %v111
  %135 = vmatpush.msra.mxu0 %v110
  %136 = vmatpush.msra.mxu0 %v109
  %137 = vmatpush.msra.mxu0 %v108
  %138 = vmatmul.f32.gmra.mxu0 %v117
  %v139 = vpop.f32.mrf.mxu0
  %v140 = vadd.f32 %v114, %v139
  %141 = vmatmul.f32.gmra.mxu0 %v120
  %v142 = vpop.f32.mrf.mxu0
  %v143 = vadd.f32 %v114, %v142
  %144 = vdwg.mxu0
  %146 = vrot.lane.b32.xlu0 %v140, 96
  %v147 = vpop.permute.xlu0 %146
  %vm148 = vcmask 130048
  %v149 = vsel %vm148, %v140, 0
  %v151 = vsel %vm148, %v147, 0
  %153 = vmatpush.xpose.msra.mxu0 0.0
  %154 = vmatpush.xpose.msra.mxu0 0.0
  %155 = vmatpush.xpose.msra.mxu0 0.0
  %156 = vmatpush.xpose.msra.mxu0 0.0
  %157 = vmatpush.xpose.msra.mxu0 0.0
  %158 = vmatpush.xpose.msra.mxu0 0.0
  %159 = vmatpush.xpose.msra.mxu0 0.0
  %160 = vmatpush.xpose.msra.mxu0 0.0
  %161 = vmatpush.xpose.msra.mxu0 0.0
  %162 = vmatpush.xpose.msra.mxu0 0.0
  %163 = vmatpush.xpose.msra.mxu0 0.0
  %164 = vmatpush.xpose.msra.mxu0 0.0
  %165 = vmatpush.xpose.msra.mxu0 0.0
  %166 = vmatpush.xpose.msra.mxu0 0.0
  %167 = vmatpush.xpose.msra.mxu0 0.0
  %168 = vmatpush.xpose.msra.mxu0 %v151
  %169 = vmatmul.f32.gmra.mxu0 %v149
  %v170 = vpop.f32.mrf.mxu0
  %v171 = vadd.f32 0.0, %v170
  %172 = vdwg.mxu0
  %vm173 = vcmask 64512
  %v174 = vsel %vm173, %v171, -inf
  %175 = vmax.xlane.f32.xlu0 %v174
  %v176 = vpop.xlane.xlu0 %175
  %v177 = vsub.f32 %v171, %v176
  %v178 = vmul.f32 %v177, 1.442695
  %v179 = vpow.pop %v178
  %v180 = vsel %vm173, %v179, 0.0
  %181 = vadd.xlane.f32.xlu0 %v180
  %v182 = vpop.xlane.xlu0 %181
  %v183 = vrcp.pop %v182
  %v184 = vmul.f32 %v179, %v183
  %185 = vrot.lane.b32.xlu0 %v140, 64
  %v186 = vpop.permute.xlu0 %185
  %v189 = vsel %vm173, %v184, 0
  %191 = vmatpush.msra.mxu0 0.0
  %192 = vmatpush.msra.mxu0 0.0
  %193 = vmatpush.msra.mxu0 0.0
  %194 = vmatpush.msra.mxu0 0.0
  %195 = vmatpush.msra.mxu0 0.0
  %196 = vmatpush.msra.mxu0 0.0
  %197 = vmatpush.msra.mxu0 0.0
  %198 = vmatpush.msra.mxu0 0.0
  %199 = vmatpush.msra.mxu0 0.0
  %200 = vmatpush.msra.mxu0 0.0
  %201 = vmatpush.msra.mxu0 0.0
  %202 = vmatpush.msra.mxu0 0.0
  %203 = vmatpush.msra.mxu0 0.0
  %204 = vmatpush.msra.mxu0 0.0
  %205 = vmatpush.msra.mxu0 0.0
  %206 = vmatpush.msra.mxu0 %v186
  %207 = vmatmul.f32.gmra.mxu0 %v189
  %v208 = vpop.f32.mrf.mxu0
  %v209 = vadd.f32 0.0, %v208
  %210 = vdwg.mxu0
  %211 = vrot.lane.b32.xlu0 %v140, 112
  %v212 = vpop.permute.xlu0 %211
  %213 = vrot.lane.b32.xlu0 %v140, 80
  %v214 = vpop.permute.xlu0 %213
  %v215 = vsel %vm148, %v212, 0
  %v217 = vsel %vm148, %v214, 0
  %219 = vmatpush.xpose.msra.mxu0 0.0
  %220 = vmatpush.xpose.msra.mxu0 0.0
  %221 = vmatpush.xpose.msra.mxu0 0.0
  %222 = vmatpush.xpose.msra.mxu0 0.0
  %223 = vmatpush.xpose.msra.mxu0 0.0
  %224 = vmatpush.xpose.msra.mxu0 0.0
  %225 = vmatpush.xpose.msra.mxu0 0.0
  %226 = vmatpush.xpose.msra.mxu0 0.0
  %227 = vmatpush.xpose.msra.mxu0 0.0
  %228 = vmatpush.xpose.msra.mxu0 0.0
  %229 = vmatpush.xpose.msra.mxu0 0.0
  %230 = vmatpush.xpose.msra.mxu0 0.0
  %231 = vmatpush.xpose.msra.mxu0 0.0
  %232 = vmatpush.xpose.msra.mxu0 0.0
  %233 = vmatpush.xpose.msra.mxu0 0.0
  %234 = vmatpush.xpose.msra.mxu0 %v217
  %235 = vmatmul.f32.gmra.mxu0 %v215
  %v236 = vpop.f32.mrf.mxu0
  %v237 = vadd.f32 0.0, %v236
  %238 = vdwg.mxu0
  %v239 = vsel %vm173, %v237, -inf
  %240 = vmax.xlane.f32.xlu0 %v239
  %v241 = vpop.xlane.xlu0 %240
  %v242 = vsub.f32 %v237, %v241
  %v243 = vmul.f32 %v242, 1.442695
  %v244 = vpow.pop %v243
  %v245 = vsel %vm173, %v244, 0.0
  %246 = vadd.xlane.f32.xlu0 %v245
  %v247 = vpop.xlane.xlu0 %246
  %v248 = vrcp.pop %v247
  %v249 = vmul.f32 %v244, %v248
  %250 = vrot.lane.b32.xlu0 %v140, 48
  %v251 = vpop.permute.xlu0 %250
  %v254 = vsel %vm173, %v249, 0
  %256 = vmatpush.msra.mxu0 0.0
  %257 = vmatpush.msra.mxu0 0.0
  %258 = vmatpush.msra.mxu0 0.0
  %259 = vmatpush.msra.mxu0 0.0
  %260 = vmatpush.msra.mxu0 0.0
  %261 = vmatpush.msra.mxu0 0.0
  %262 = vmatpush.msra.mxu0 0.0
  %263 = vmatpush.msra.mxu0 0.0
  %264 = vmatpush.msra.mxu0 0.0
  %265 = vmatpush.msra.mxu0 0.0
  %266 = vmatpush.msra.mxu0 0.0
  %267 = vmatpush.msra.mxu0 0.0
  %268 = vmatpush.msra.mxu0 0.0
  %269 = vmatpush.msra.mxu0 0.0
  %270 = vmatpush.msra.mxu0 0.0
  %271 = vmatpush.msra.mxu0 %v251
  %272 = vmatmul.f32.gmra.mxu0 %v254
  %v273 = vpop.f32.mrf.mxu0
  %v274 = vadd.f32 0.0, %v273
  %275 = vdwg.mxu0
  %277 = vrot.lane.b32.xlu0 %v274, 16
  %v278 = vpop.permute.xlu0 %277
  %v280 = vsel %vm148, %v209, %v278
  %282 = vrot.lane.b32.xlu0 %v143, 96
  %v283 = vpop.permute.xlu0 %282
  %v284 = vsel %vm148, %v143, 0
  %v286 = vsel %vm148, %v283, 0
  %288 = vmatpush.xpose.msra.mxu0 0.0
  %289 = vmatpush.xpose.msra.mxu0 0.0
  %290 = vmatpush.xpose.msra.mxu0 0.0
  %291 = vmatpush.xpose.msra.mxu0 0.0
  %292 = vmatpush.xpose.msra.mxu0 0.0
  %293 = vmatpush.xpose.msra.mxu0 0.0
  %294 = vmatpush.xpose.msra.mxu0 0.0
  %295 = vmatpush.xpose.msra.mxu0 0.0
  %296 = vmatpush.xpose.msra.mxu0 0.0
  %297 = vmatpush.xpose.msra.mxu0 0.0
  %298 = vmatpush.xpose.msra.mxu0 0.0
  %299 = vmatpush.xpose.msra.mxu0 0.0
  %300 = vmatpush.xpose.msra.mxu0 0.0
  %301 = vmatpush.xpose.msra.mxu0 0.0
  %302 = vmatpush.xpose.msra.mxu0 0.0
  %303 = vmatpush.xpose.msra.mxu0 %v286
  %304 = vmatmul.f32.gmra.mxu0 %v284
  %v305 = vpop.f32.mrf.mxu0
  %v306 = vadd.f32 0.0, %v305
  %307 = vdwg.mxu0
  %v308 = vsel %vm173, %v306, -inf
  %309 = vmax.xlane.f32.xlu0 %v308
  %v310 = vpop.xlane.xlu0 %309
  %v311 = vsub.f32 %v306, %v310
  %v312 = vmul.f32 %v311, 1.442695
  %v313 = vpow.pop %v312
  %v314 = vsel %vm173, %v313, 0.0
  %315 = vadd.xlane.f32.xlu0 %v314
  %v316 = vpop.xlane.xlu0 %315
  %v317 = vrcp.pop %v316
  %v318 = vmul.f32 %v313, %v317
  %319 = vrot.lane.b32.xlu0 %v143, 64
  %v320 = vpop.permute.xlu0 %319
  %v323 = vsel %vm173, %v318, 0
  %325 = vmatpush.msra.mxu0 0.0
  %326 = vmatpush.msra.mxu0 0.0
  %327 = vmatpush.msra.mxu0 0.0
  %328 = vmatpush.msra.mxu0 0.0
  %329 = vmatpush.msra.mxu0 0.0
  %330 = vmatpush.msra.mxu0 0.0
  %331 = vmatpush.msra.mxu0 0.0
  %332 = vmatpush.msra.mxu0 0.0
  %333 = vmatpush.msra.mxu0 0.0
  %334 = vmatpush.msra.mxu0 0.0
  %335 = vmatpush.msra.mxu0 0.0
  %336 = vmatpush.msra.mxu0 0.0
  %337 = vmatpush.msra.mxu0 0.0
  %338 = vmatpush.msra.mxu0 0.0
  %339 = vmatpush.msra.mxu0 0.0
  %340 = vmatpush.msra.mxu0 %v320
  %341 = vmatmul.f32.gmra.mxu0 %v323
  %v342 = vpop.f32.mrf.mxu0
  %v343 = vadd.f32 0.0, %v342
  %344 = vdwg.mxu0
  %345 = vrot.lane.b32.xlu0 %v143, 112
  %v346 = vpop.permute.xlu0 %345
  %347 = vrot.lane.b32.xlu0 %v143, 80
  %v348 = vpop.permute.xlu0 %347
  %v349 = vsel %vm148, %v346, 0
  %v351 = vsel %vm148, %v348, 0
  %353 = vmatpush.xpose.msra.mxu0 0.0
  %354 = vmatpush.xpose.msra.mxu0 0.0
  %355 = vmatpush.xpose.msra.mxu0 0.0
  %356 = vmatpush.xpose.msra.mxu0 0.0
  %357 = vmatpush.xpose.msra.mxu0 0.0
  %358 = vmatpush.xpose.msra.mxu0 0.0
  %359 = vmatpush.xpose.msra.mxu0 0.0
  %360 = vmatpush.xpose.msra.mxu0 0.0
  %361 = vmatpush.xpose.msra.mxu0 0.0
  %362 = vmatpush.xpose.msra.mxu0 0.0
  %363 = vmatpush.xpose.msra.mxu0 0.0
  %364 = vmatpush.xpose.msra.mxu0 0.0
  %365 = vmatpush.xpose.msra.mxu0 0.0
  %366 = vmatpush.xpose.msra.mxu0 0.0
  %367 = vmatpush.xpose.msra.mxu0 0.0
  %368 = vmatpush.xpose.msra.mxu0 %v351
  %369 = vmatmul.f32.gmra.mxu0 %v349
  %v370 = vpop.f32.mrf.mxu0
  %v371 = vadd.f32 0.0, %v370
  %372 = vdwg.mxu0
  %v373 = vsel %vm173, %v371, -inf
  %374 = vmax.xlane.f32.xlu0 %v373
  %v375 = vpop.xlane.xlu0 %374
  %v376 = vsub.f32 %v371, %v375
  %v377 = vmul.f32 %v376, 1.442695
  %v378 = vpow.pop %v377
  %v379 = vsel %vm173, %v378, 0.0
  %380 = vadd.xlane.f32.xlu0 %v379
  %v381 = vpop.xlane.xlu0 %380
  %v382 = vrcp.pop %v381
  %v383 = vmul.f32 %v378, %v382
  %384 = vrot.lane.b32.xlu0 %v143, 48
  %v385 = vpop.permute.xlu0 %384
  %v388 = vsel %vm173, %v383, 0
  %390 = vmatpush.msra.mxu0 0.0
  %391 = vmatpush.msra.mxu0 0.0
  %392 = vmatpush.msra.mxu0 0.0
  %393 = vmatpush.msra.mxu0 0.0
  %394 = vmatpush.msra.mxu0 0.0
  %395 = vmatpush.msra.mxu0 0.0
  %396 = vmatpush.msra.mxu0 0.0
  %397 = vmatpush.msra.mxu0 0.0
  %398 = vmatpush.msra.mxu0 0.0
  %399 = vmatpush.msra.mxu0 0.0
  %400 = vmatpush.msra.mxu0 0.0
  %401 = vmatpush.msra.mxu0 0.0
  %402 = vmatpush.msra.mxu0 0.0
  %403 = vmatpush.msra.mxu0 0.0
  %404 = vmatpush.msra.mxu0 0.0
  %405 = vmatpush.msra.mxu0 %v385
  %406 = vmatmul.f32.gmra.mxu0 %v388
  %v407 = vpop.f32.mrf.mxu0
  %v408 = vadd.f32 0.0, %v407
  %409 = vdwg.mxu0
  %411 = vrot.lane.b32.xlu0 %v408, 16
  %v412 = vpop.permute.xlu0 %411
  %v414 = vsel %vm148, %v343, %v412
  %v415 = vld [vmem:[%s8] sm:$0x3f]
  %v416 = vld [vmem:[%s4] sm:$0xff]
  %v417 = vld [vmem:[%s4 + $0x8] sm:$0xff]
  %v418 = vld [vmem:[%s4 + $0x10] sm:$0xff]
  %v419 = vld [vmem:[%s4 + $0x18] sm:$0xff]
  %v420 = vperm.slane %v415, 0
  %v422 = vsel %vm50, %v280, 0
  %v425 = vsel %vm50, %v414, 0
  %427 = vmatpush.msra.mxu0 0.0
  %428 = vmatpush.msra.mxu0 0.0
  %429 = vmatpush.msra.mxu0 0.0
  %430 = vmatpush.msra.mxu0 0.0
  %431 = vmatpush.msra.mxu0 0.0
  %432 = vmatpush.msra.mxu0 0.0
  %433 = vmatpush.msra.mxu0 0.0
  %434 = vmatpush.msra.mxu0 0.0
  %435 = vmatpush.msra.mxu0 0.0
  %436 = vmatpush.msra.mxu0 0.0
  %437 = vmatpush.msra.mxu0 0.0
  %438 = vmatpush.msra.mxu0 0.0
  %439 = vmatpush.msra.mxu0 %v419
  %440 = vmatpush.msra.mxu0 %v418
  %441 = vmatpush.msra.mxu0 %v417
  %442 = vmatpush.msra.mxu0 %v416
  %443 = vmatmul.f32.gmra.mxu0 %v422
  %v444 = vpop.f32.mrf.mxu0
  %v445 = vadd.f32 %v420, %v444
  %446 = vmatmul.f32.gmra.mxu0 %v425
  %v447 = vpop.f32.mrf.mxu0
  %v448 = vadd.f32 %v420, %v447
  %449 = vdwg.mxu0
  %v450 = vadd.f32 %v106, %v445
  %v451 = vadd.f32 %v107, %v448
  %v452 = vsel %vm50, %v450, 0.0
  %453 = vadd.xlane.f32.xlu0 %v452
  %v454 = vpop.xlane.xlu0 %453
  %v455 = vsel %vm50, %v451, 0.0
  %456 = vadd.xlane.f32.xlu0 %v455
  %v457 = vpop.xlane.xlu0 %456
  %v458 = vmul.f32 %v454, %v63
  %v459 = vmul.f32 %v457, %v63
  %v460 = vsub.f32 %v450, %v458
  %v461 = vsub.f32 %v451, %v459
  %v462 = vmul.f32 %v460, %v460
  %v463 = vmul.f32 %v461, %v461
  %v464 = vsel %vm50, %v462, 0.0
  %465 = vadd.xlane.f32.xlu0 %v464
  %v466 = vpop.xlane.xlu0 %465
  %v467 = vsel %vm50, %v463, 0.0
  %468 = vadd.xlane.f32.xlu0 %v467
  %v469 = vpop.xlane.xlu0 %468
  %v470 = vmul.f32 %v466, %v63
  %v471 = vmul.f32 %v469, %v63
  %v472 = vadd.f32 %v470, 1e-12
  %v473 = vadd.f32 %v471, 1e-12
  %v474 = vrsqrt.pop %v472
  %v475 = vmul.f32 %v474, %v472
  %v476 = vmul.f32 %v475, %v474
  %v477 = vmul.f32 0.5, %v476
  %v478 = vsub.f32 1.5, %v477
  %v479 = vmul.f32 %v474, %v478
  %vm480 = vweird.f32 %v472
  %vm481 = vweird.f32 %v474
  %vm482 = vmor %vm480, %vm481
  %v483 = vsel %vm482, %v474, %v479
  %v484 = vrsqrt.pop %v473
  %v485 = vmul.f32 %v484, %v473
  %v486 = vmul.f32 %v485, %v484
  %v487 = vmul.f32 0.5, %v486
  %v488 = vsub.f32 1.5, %v487
  %v489 = vmul.f32 %v484, %v488
  %vm490 = vweird.f32 %v473
  %vm491 = vweird.f32 %v484
  %vm492 = vmor %vm490, %vm491
  %v493 = vsel %vm492, %v484, %v489
  %v494 = vmul.f32 %v460, %v483
  %v495 = vmul.f32 %v461, %v493
  %v496 = vperm.slane %v415, 2
  %v497 = vmul.f32 %v494, %v496
  %v498 = vmul.f32 %v495, %v496
  %v499 = vperm.slane %v415, 3
  %v500 = vadd.f32 %v497, %v499
  %v501 = vadd.f32 %v498, %v499
  %v502 = vld [vmem:[%s5] sm:$0xff]
  %v503 = vld [vmem:[%s5 + $0x8] sm:$0xff]
  %v504 = vld [vmem:[%s5 + $0x10] sm:$0xff]
  %v505 = vld [vmem:[%s5 + $0x18] sm:$0xff]
  %v506 = vld [vmem:[%s6] sm:$0x1]
  %v508 = vperm.slane %v506, 0
  %v511 = vsel %vm50, %v500, 0
  %v514 = vsel %vm50, %v501, 0
  %516 = vmatpush.msra.mxu0 0.0
  %517 = vmatpush.msra.mxu0 0.0
  %518 = vmatpush.msra.mxu0 0.0
  %519 = vmatpush.msra.mxu0 0.0
  %520 = vmatpush.msra.mxu0 0.0
  %521 = vmatpush.msra.mxu0 0.0
  %522 = vmatpush.msra.mxu0 0.0
  %523 = vmatpush.msra.mxu0 0.0
  %524 = vmatpush.msra.mxu0 0.0
  %525 = vmatpush.msra.mxu0 0.0
  %526 = vmatpush.msra.mxu0 0.0
  %527 = vmatpush.msra.mxu0 0.0
  %528 = vmatpush.msra.mxu0 %v505
  %529 = vmatpush.msra.mxu0 %v504
  %530 = vmatpush.msra.mxu0 %v503
  %531 = vmatpush.msra.mxu0 %v502
  %532 = vmatmul.f32.gmra.mxu0 %v511
  %v533 = vpop.f32.mrf.mxu0
  %v534 = vadd.f32 %v508, %v533
  %535 = vmatmul.f32.gmra.mxu0 %v514
  %v536 = vpop.f32.mrf.mxu0
  %v537 = vadd.f32 %v508, %v536
  %538 = vdwg.mxu0
  %v539 = vmul.f32 %v534, 0.5
  %v540 = vmul.f32 %v537, 0.5
  %v541 = vmul.f32 %v534, 0.044715
  %v542 = vmul.f32 %v537, 0.044715
  %v543 = vmul.f32 %v541, %v534
  %v544 = vmul.f32 %v542, %v537
  %v545 = vmul.f32 %v543, %v534
  %v546 = vmul.f32 %v544, %v537
  %v547 = vadd.f32 %v534, %v545
  %v548 = vadd.f32 %v537, %v546
  %v549 = vmul.f32 %v547, 0.7978846
  %v550 = vmul.f32 %v548, 0.7978846
  %v551 = vtanh.pop %v549
  %v552 = vtanh.pop %v550
  %v553 = vadd.f32 %v551, 1.0
  %v554 = vadd.f32 %v552, 1.0
  %v555 = vmul.f32 %v539, %v553
  %v556 = vmul.f32 %v540, %v554
  %v557 = vld [vmem:[%s7] sm:$0xff]
  %v558 = vld [vmem:[%s7 + $0x8] sm:$0xff]
  %v559 = vld [vmem:[%s7 + $0x10] sm:$0xff]
  %v560 = vld [vmem:[%s7 + $0x18] sm:$0xff]
  %v561 = vld [vmem:[%s7 + $0x20] sm:$0xff]
  %v562 = vld [vmem:[%s7 + $0x28] sm:$0xff]
  %v563 = vld [vmem:[%s7 + $0x30] sm:$0xff]
  %v564 = vld [vmem:[%s7 + $0x38] sm:$0xff]
  %v565 = vperm.slane %v415, 1
  %vm566 = vcmask 523264
  %v568 = vsel %vm566, %v555, 0
  %v571 = vsel %vm566, %v556, 0
  %573 = vmatpush.msra.mxu0 0.0
  %574 = vmatpush.msra.mxu0 0.0
  %575 = vmatpush.msra.mxu0 0.0
  %576 = vmatpush.msra.mxu0 0.0
  %577 = vmatpush.msra.mxu0 0.0
  %578 = vmatpush.msra.mxu0 0.0
  %579 = vmatpush.msra.mxu0 0.0
  %580 = vmatpush.msra.mxu0 0.0
  %581 = vmatpush.msra.mxu0 %v564
  %582 = vmatpush.msra.mxu0 %v563
  %583 = vmatpush.msra.mxu0 %v562
  %584 = vmatpush.msra.mxu0 %v561
  %585 = vmatpush.msra.mxu0 %v560
  %586 = vmatpush.msra.mxu0 %v559
  %587 = vmatpush.msra.mxu0 %v558
  %588 = vmatpush.msra.mxu0 %v557
  %589 = vmatmul.f32.gmra.mxu0 %v568
  %v590 = vpop.f32.mrf.mxu0
  %v591 = vadd.f32 %v565, %v590
  %592 = vmatmul.f32.gmra.mxu0 %v571
  %v593 = vpop.f32.mrf.mxu0
  %v594 = vadd.f32 %v565, %v593
  %595 = vdwg.mxu0
  %v596 = vadd.f32 %v500, %v591
  %v597 = vadd.f32 %v501, %v594
  %v598 = vsel %vm50, %v596, 0.0
  %599 = vadd.xlane.f32.xlu0 %v598
  %v600 = vpop.xlane.xlu0 %599
  %v601 = vsel %vm50, %v597, 0.0
  %602 = vadd.xlane.f32.xlu0 %v601
  %v603 = vpop.xlane.xlu0 %602
  %v604 = vmul.f32 %v600, %v63
  %v605 = vmul.f32 %v603, %v63
  %v606 = vsub.f32 %v596, %v604
  %v607 = vsub.f32 %v597, %v605
  %v608 = vmul.f32 %v606, %v606
  %v609 = vmul.f32 %v607, %v607
  %v610 = vsel %vm50, %v608, 0.0
  %611 = vadd.xlane.f32.xlu0 %v610
  %v612 = vpop.xlane.xlu0 %611
  %v613 = vsel %vm50, %v609, 0.0
  %614 = vadd.xlane.f32.xlu0 %v613
  %v615 = vpop.xlane.xlu0 %614
  %v616 = vmul.f32 %v612, %v63
  %v617 = vmul.f32 %v615, %v63
  %v618 = vadd.f32 %v616, 1e-12
  %v619 = vadd.f32 %v617, 1e-12
  %v620 = vrsqrt.pop %v618
  %v621 = vmul.f32 %v620, %v618
  %v622 = vmul.f32 %v621, %v620
  %v623 = vmul.f32 0.5, %v622
  %v624 = vsub.f32 1.5, %v623
  %v625 = vmul.f32 %v620, %v624
  %vm626 = vweird.f32 %v618
  %vm627 = vweird.f32 %v620
  %vm628 = vmor %vm626, %vm627
  %v629 = vsel %vm628, %v620, %v625
  %v630 = vrsqrt.pop %v619
  %v631 = vmul.f32 %v630, %v619
  %v632 = vmul.f32 %v631, %v630
  %v633 = vmul.f32 0.5, %v632
  %v634 = vsub.f32 1.5, %v633
  %v635 = vmul.f32 %v630, %v634
  %vm636 = vweird.f32 %v619
  %vm637 = vweird.f32 %v630
  %vm638 = vmor %vm636, %vm637
  %v639 = vsel %vm638, %v630, %v635
  %v640 = vmul.f32 %v606, %v629
  %v641 = vmul.f32 %v607, %v639
  %v642 = vperm.slane %v415, 4
  %v643 = vmul.f32 %v640, %v642
  %v644 = vmul.f32 %v641, %v642
  %v645 = vperm.slane %v415, 5
  %v646 = vadd.f32 %v643, %v645
  %v647 = vadd.f32 %v644, %v645
  %s648 = scalar_lea.vmem %s2, 32
  %v649 = vld [vmem:[%s648] sm:$0xff]
  %v650 = vld [vmem:[%s648 + $0x8] sm:$0xff]
  %v651 = vld [vmem:[%s648 + $0x10] sm:$0xff]
  %v652 = vld [vmem:[%s648 + $0x18] sm:$0xff]
  %s653 = scalar_lea.vmem %s3, 1
  %v654 = vld [vmem:[%s653] sm:$0x1]
  %v656 = vperm.slane %v654, 0
  %v659 = vsel %vm50, %v646, 0
  %v662 = vsel %vm50, %v647, 0
  %664 = vmatpush.msra.mxu0 0.0
  %665 = vmatpush.msra.mxu0 0.0
  %666 = vmatpush.msra.mxu0 0.0
  %667 = vmatpush.msra.mxu0 0.0
  %668 = vmatpush.msra.mxu0 0.0
  %669 = vmatpush.msra.mxu0 0.0
  %670 = vmatpush.msra.mxu0 0.0
  %671 = vmatpush.msra.mxu0 0.0
  %672 = vmatpush.msra.mxu0 0.0
  %673 = vmatpush.msra.mxu0 0.0
  %674 = vmatpush.msra.mxu0 0.0
  %675 = vmatpush.msra.mxu0 0.0
  %676 = vmatpush.msra.mxu0 %v652
  %677 = vmatpush.msra.mxu0 %v651
  %678 = vmatpush.msra.mxu0 %v650
  %679 = vmatpush.msra.mxu0 %v649
  %680 = vmatmul.f32.gmra.mxu0 %v659
  %v681 = vpop.f32.mrf.mxu0
  %v682 = vadd.f32 %v656, %v681
  %683 = vmatmul.f32.gmra.mxu0 %v662
  %v684 = vpop.f32.mrf.mxu0
  %v685 = vadd.f32 %v656, %v684
  %686 = vdwg.mxu0
  %688 = vrot.lane.b32.xlu0 %v682, 96
  %v689 = vpop.permute.xlu0 %688
  %v690 = vsel %vm148, %v682, 0
  %v692 = vsel %vm148, %v689, 0
  %694 = vmatpush.xpose.msra.mxu0 0.0
  %695 = vmatpush.xpose.msra.mxu0 0.0
  %696 = vmatpush.xpose.msra.mxu0 0.0
  %697 = vmatpush.xpose.msra.mxu0 0.0
  %698 = vmatpush.xpose.msra.mxu0 0.0
  %699 = vmatpush.xpose.msra.mxu0 0.0
  %700 = vmatpush.xpose.msra.mxu0 0.0
  %701 = vmatpush.xpose.msra.mxu0 0.0
  %702 = vmatpush.xpose.msra.mxu0 0.0
  %703 = vmatpush.xpose.msra.mxu0 0.0
  %704 = vmatpush.xpose.msra.mxu0 0.0
  %705 = vmatpush.xpose.msra.mxu0 0.0
  %706 = vmatpush.xpose.msra.mxu0 0.0
  %707 = vmatpush.xpose.msra.mxu0 0.0
  %708 = vmatpush.xpose.msra.mxu0 0.0
  %709 = vmatpush.xpose.msra.mxu0 %v692
  %710 = vmatmul.f32.gmra.mxu0 %v690
  %v711 = vpop.f32.mrf.mxu0
  %v712 = vadd.f32 0.0, %v711
  %713 = vdwg.mxu0
  %v714 = vsel %vm173, %v712, -inf
  %715 = vmax.xlane.f32.xlu0 %v714
  %v716 = vpop.xlane.xlu0 %715
  %v717 = vsub.f32 %v712, %v716
  %v718 = vmul.f32 %v717, 1.442695
  %v719 = vpow.pop %v718
  %v720 = vsel %vm173, %v719, 0.0
  %721 = vadd.xlane.f32.xlu0 %v720
  %v722 = vpop.xlane.xlu0 %721
  %v723 = vrcp.pop %v722
  %v724 = vmul.f32 %v719, %v723
  %725 = vrot.lane.b32.xlu0 %v682, 64
  %v726 = vpop.permute.xlu0 %725
  %v729 = vsel %vm173, %v724, 0
  %731 = vmatpush.msra.mxu0 0.0
  %732 = vmatpush.msra.mxu0 0.0
  %733 = vmatpush.msra.mxu0 0.0
  %734 = vmatpush.msra.mxu0 0.0
  %735 = vmatpush.msra.mxu0 0.0
  %736 = vmatpush.msra.mxu0 0.0
  %737 = vmatpush.msra.mxu0 0.0
  %738 = vmatpush.msra.mxu0 0.0
  %739 = vmatpush.msra.mxu0 0.0
  %740 = vmatpush.msra.mxu0 0.0
  %741 = vmatpush.msra.mxu0 0.0
  %742 = vmatpush.msra.mxu0 0.0
  %743 = vmatpush.msra.mxu0 0.0
  %744 = vmatpush.msra.mxu0 0.0
  %745 = vmatpush.msra.mxu0 0.0
  %746 = vmatpush.msra.mxu0 %v726
  %747 = vmatmul.f32.gmra.mxu0 %v729
  %v748 = vpop.f32.mrf.mxu0
  %v749 = vadd.f32 0.0, %v748
  %750 = vdwg.mxu0
  %751 = vrot.lane.b32.xlu0 %v682, 112
  %v752 = vpop.permute.xlu0 %751
  %753 = vrot.lane.b32.xlu0 %v682, 80
  %v754 = vpop.permute.xlu0 %753
  %v755 = vsel %vm148, %v752, 0
  %v757 = vsel %vm148, %v754, 0
  %759 = vmatpush.xpose.msra.mxu0 0.0
  %760 = vmatpush.xpose.msra.mxu0 0.0
  %761 = vmatpush.xpose.msra.mxu0 0.0
  %762 = vmatpush.xpose.msra.mxu0 0.0
  %763 = vmatpush.xpose.msra.mxu0 0.0
  %764 = vmatpush.xpose.msra.mxu0 0.0
  %765 = vmatpush.xpose.msra.mxu0 0.0
  %766 = vmatpush.xpose.msra.mxu0 0.0
  %767 = vmatpush.xpose.msra.mxu0 0.0
  %768 = vmatpush.xpose.msra.mxu0 0.0
  %769 = vmatpush.xpose.msra.mxu0 0.0
  %770 = vmatpush.xpose.msra.mxu0 0.0
  %771 = vmatpush.xpose.msra.mxu0 0.0
  %772 = vmatpush.xpose.msra.mxu0 0.0
  %773 = vmatpush.xpose.msra.mxu0 0.0
  %774 = vmatpush.xpose.msra.mxu0 %v757
  %775 = vmatmul.f32.gmra.mxu0 %v755
  %v776 = vpop.f32.mrf.mxu0
  %v777 = vadd.f32 0.0, %v776
  %778 = vdwg.mxu0
  %v779 = vsel %vm173, %v777, -inf
  %780 = vmax.xlane.f32.xlu0 %v779
  %v781 = vpop.xlane.xlu0 %780
  %v782 = vsub.f32 %v777, %v781
  %v783 = vmul.f32 %v782, 1.442695
  %v784 = vpow.pop %v783
  %v785 = vsel %vm173, %v784, 0.0
  %786 = vadd.xlane.f32.xlu0 %v785
  %v787 = vpop.xlane.xlu0 %786
  %v788 = vrcp.pop %v787
  %v789 = vmul.f32 %v784, %v788
  %790 = vrot.lane.b32.xlu0 %v682, 48
  %v791 = vpop.permute.xlu0 %790
  %v794 = vsel %vm173, %v789, 0
  %796 = vmatpush.msra.mxu0 0.0
  %797 = vmatpush.msra.mxu0 0.0
  %798 = vmatpush.msra.mxu0 0.0
  %799 = vmatpush.msra.mxu0 0.0
  %800 = vmatpush.msra.mxu0 0.0
  %801 = vmatpush.msra.mxu0 0.0
  %802 = vmatpush.msra.mxu0 0.0
  %803 = vmatpush.msra.mxu0 0.0
  %804 = vmatpush.msra.mxu0 0.0
  %805 = vmatpush.msra.mxu0 0.0
  %806 = vmatpush.msra.mxu0 0.0
  %807 = vmatpush.msra.mxu0 0.0
  %808 = vmatpush.msra.mxu0 0.0
  %809 = vmatpush.msra.mxu0 0.0
  %810 = vmatpush.msra.mxu0 0.0
  %811 = vmatpush.msra.mxu0 %v791
  %812 = vmatmul.f32.gmra.mxu0 %v794
  %v813 = vpop.f32.mrf.mxu0
  %v814 = vadd.f32 0.0, %v813
  %815 = vdwg.mxu0
  %817 = vrot.lane.b32.xlu0 %v814, 16
  %v818 = vpop.permute.xlu0 %817
  %v820 = vsel %vm148, %v749, %v818
  %822 = vrot.lane.b32.xlu0 %v685, 96
  %v823 = vpop.permute.xlu0 %822
  %v824 = vsel %vm148, %v685, 0
  %v826 = vsel %vm148, %v823, 0
  %828 = vmatpush.xpose.msra.mxu0 0.0
  %829 = vmatpush.xpose.msra.mxu0 0.0
  %830 = vmatpush.xpose.msra.mxu0 0.0
  %831 = vmatpush.xpose.msra.mxu0 0.0
  %832 = vmatpush.xpose.msra.mxu0 0.0
  %833 = vmatpush.xpose.msra.mxu0 0.0
  %834 = vmatpush.xpose.msra.mxu0 0.0
  %835 = vmatpush.xpose.msra.mxu0 0.0
  %836 = vmatpush.xpose.msra.mxu0 0.0
  %837 = vmatpush.xpose.msra.mxu0 0.0
  %838 = vmatpush.xpose.msra.mxu0 0.0
  %839 = vmatpush.xpose.msra.mxu0 0.0
  %840 = vmatpush.xpose.msra.mxu0 0.0
  %841 = vmatpush.xpose.msra.mxu0 0.0
  %842 = vmatpush.xpose.msra.mxu0 0.0
  %843 = vmatpush.xpose.msra.mxu0 %v826
  %844 = vmatmul.f32.gmra.mxu0 %v824
  %v845 = vpop.f32.mrf.mxu0
  %v846 = vadd.f32 0.0, %v845
  %847 = vdwg.mxu0
  %v848 = vsel %vm173, %v846, -inf
  %849 = vmax.xlane.f32.xlu0 %v848
  %v850 = vpop.xlane.xlu0 %849
  %v851 = vsub.f32 %v846, %v850
  %v852 = vmul.f32 %v851, 1.442695
  %v853 = vpow.pop %v852
  %v854 = vsel %vm173, %v853, 0.0
  %855 = vadd.xlane.f32.xlu0 %v854
  %v856 = vpop.xlane.xlu0 %855
  %v857 = vrcp.pop %v856
  %v858 = vmul.f32 %v853, %v857
  %859 = vrot.lane.b32.xlu0 %v685, 64
  %v860 = vpop.permute.xlu0 %859
  %v863 = vsel %vm173, %v858, 0
  %865 = vmatpush.msra.mxu0 0.0
  %866 = vmatpush.msra.mxu0 0.0
  %867 = vmatpush.msra.mxu0 0.0
  %868 = vmatpush.msra.mxu0 0.0
  %869 = vmatpush.msra.mxu0 0.0
  %870 = vmatpush.msra.mxu0 0.0
  %871 = vmatpush.msra.mxu0 0.0
  %872 = vmatpush.msra.mxu0 0.0
  %873 = vmatpush.msra.mxu0 0.0
  %874 = vmatpush.msra.mxu0 0.0
  %875 = vmatpush.msra.mxu0 0.0
  %876 = vmatpush.msra.mxu0 0.0
  %877 = vmatpush.msra.mxu0 0.0
  %878 = vmatpush.msra.mxu0 0.0
  %879 = vmatpush.msra.mxu0 0.0
  %880 = vmatpush.msra.mxu0 %v860
  %881 = vmatmul.f32.gmra.mxu0 %v863
  %v882 = vpop.f32.mrf.mxu0
  %v883 = vadd.f32 0.0, %v882
  %884 = vdwg.mxu0
  %885 = vrot.lane.b32.xlu0 %v685, 112
  %v886 = vpop.permute.xlu0 %885
  %887 = vrot.lane.b32.xlu0 %v685, 80
  %v888 = vpop.permute.xlu0 %887
  %v889 = vsel %vm148, %v886, 0
  %v891 = vsel %vm148, %v888, 0
  %893 = vmatpush.xpose.msra.mxu0 0.0
  %894 = vmatpush.xpose.msra.mxu0 0.0
  %895 = vmatpush.xpose.msra.mxu0 0.0
  %896 = vmatpush.xpose.msra.mxu0 0.0
  %897 = vmatpush.xpose.msra.mxu0 0.0
  %898 = vmatpush.xpose.msra.mxu0 0.0
  %899 = vmatpush.xpose.msra.mxu0 0.0
  %900 = vmatpush.xpose.msra.mxu0 0.0
  %901 = vmatpush.xpose.msra.mxu0 0.0
  %902 = vmatpush.xpose.msra.mxu0 0.0
  %903 = vmatpush.xpose.msra.mxu0 0.0
  %904 = vmatpush.xpose.msra.mxu0 0.0
  %905 = vmatpush.xpose.msra.mxu0 0.0
  %906 = vmatpush.xpose.msra.mxu0 0.0
  %907 = vmatpush.xpose.msra.mxu0 0.0
  %908 = vmatpush.xpose.msra.mxu0 %v891
  %909 = vmatmul.f32.gmra.mxu0 %v889
  %v910 = vpop.f32.mrf.mxu0
  %v911 = vadd.f32 0.0, %v910
  %912 = vdwg.mxu0
  %v913 = vsel %vm173, %v911, -inf
  %914 = vmax.xlane.f32.xlu0 %v913
  %v915 = vpop.xlane.xlu0 %914
  %v916 = vsub.f32 %v911, %v915
  %v917 = vmul.f32 %v916, 1.442695
  %v918 = vpow.pop %v917
  %v919 = vsel %vm173, %v918, 0.0
  %920 = vadd.xlane.f32.xlu0 %v919
  %v921 = vpop.xlane.xlu0 %920
  %v922 = vrcp.pop %v921
  %v923 = vmul.f32 %v918, %v922
  %924 = vrot.lane.b32.xlu0 %v685, 48
  %v925 = vpop.permute.xlu0 %924
  %v928 = vsel %vm173, %v923, 0
  %930 = vmatpush.msra.mxu0 0.0
  %931 = vmatpush.msra.mxu0 0.0
  %932 = vmatpush.msra.mxu0 0.0
  %933 = vmatpush.msra.mxu0 0.0
  %934 = vmatpush.msra.mxu0 0.0
  %935 = vmatpush.msra.mxu0 0.0
  %936 = vmatpush.msra.mxu0 0.0
  %937 = vmatpush.msra.mxu0 0.0
  %938 = vmatpush.msra.mxu0 0.0
  %939 = vmatpush.msra.mxu0 0.0
  %940 = vmatpush.msra.mxu0 0.0
  %941 = vmatpush.msra.mxu0 0.0
  %942 = vmatpush.msra.mxu0 0.0
  %943 = vmatpush.msra.mxu0 0.0
  %944 = vmatpush.msra.mxu0 0.0
  %945 = vmatpush.msra.mxu0 %v925
  %946 = vmatmul.f32.gmra.mxu0 %v928
  %v947 = vpop.f32.mrf.mxu0
  %v948 = vadd.f32 0.0, %v947
  %949 = vdwg.mxu0
  %951 = vrot.lane.b32.xlu0 %v948, 16
  %v952 = vpop.permute.xlu0 %951
  %v954 = vsel %vm148, %v883, %v952
  %s955 = scalar_lea.vmem %s8, 8
  %v956 = vld [vmem:[%s955] sm:$0x3f]
  %s957 = scalar_lea.vmem %s4, 32
  %v958 = vld [vmem:[%s957] sm:$0xff]
  %v959 = vld [vmem:[%s957 + $0x8] sm:$0xff]
  %v960 = vld [vmem:[%s957 + $0x10] sm:$0xff]
  %v961 = vld [vmem:[%s957 + $0x18] sm:$0xff]
  %v962 = vperm.slane %v956, 0
  %v964 = vsel %vm50, %v820, 0
  %v967 = vsel %vm50, %v954, 0
  %969 = vmatpush.msra.mxu0 0.0
  %970 = vmatpush.msra.mxu0 0.0
  %971 = vmatpush.msra.mxu0 0.0
  %972 = vmatpush.msra.mxu0 0.0
  %973 = vmatpush.msra.mxu0 0.0
  %974 = vmatpush.msra.mxu0 0.0
  %975 = vmatpush.msra.mxu0 0.0
  %976 = vmatpush.msra.mxu0 0.0
  %977 = vmatpush.msra.mxu0 0.0
  %978 = vmatpush.msra.mxu0 0.0
  %979 = vmatpush.msra.mxu0 0.0
  %980 = vmatpush.msra.mxu0 0.0
  %981 = vmatpush.msra.mxu0 %v961
  %982 = vmatpush.msra.mxu0 %v960
  %983 = vmatpush.msra.mxu0 %v959
  %984 = vmatpush.msra.mxu0 %v958
  %985 = vmatmul.f32.gmra.mxu0 %v964
  %v986 = vpop.f32.mrf.mxu0
  %v987 = vadd.f32 %v962, %v986
  %988 = vmatmul.f32.gmra.mxu0 %v967
  %v989 = vpop.f32.mrf.mxu0
  %v990 = vadd.f32 %v962, %v989
  %991 = vdwg.mxu0
  %v992 = vadd.f32 %v646, %v987
  %v993 = vadd.f32 %v647, %v990
  %v994 = vsel %vm50, %v992, 0.0
  %995 = vadd.xlane.f32.xlu0 %v994
  %v996 = vpop.xlane.xlu0 %995
  %v997 = vsel %vm50, %v993, 0.0
  %998 = vadd.xlane.f32.xlu0 %v997
  %v999 = vpop.xlane.xlu0 %998
  %v1000 = vmul.f32 %v996, %v63
  %v1001 = vmul.f32 %v999, %v63
  %v1002 = vsub.f32 %v992, %v1000
  %v1003 = vsub.f32 %v993, %v1001
  %v1004 = vmul.f32 %v1002, %v1002
  %v1005 = vmul.f32 %v1003, %v1003
  %v1006 = vsel %vm50, %v1004, 0.0
  %1007 = vadd.xlane.f32.xlu0 %v1006
  %v1008 = vpop.xlane.xlu0 %1007
  %v1009 = vsel %vm50, %v1005, 0.0
  %1010 = vadd.xlane.f32.xlu0 %v1009
  %v1011 = vpop.xlane.xlu0 %1010
  %v1012 = vmul.f32 %v1008, %v63
  %v1013 = vmul.f32 %v1011, %v63
  %v1014 = vadd.f32 %v1012, 1e-12
  %v1015 = vadd.f32 %v1013, 1e-12
  %v1016 = vrsqrt.pop %v1014
  %v1017 = vmul.f32 %v1016, %v1014
  %v1018 = vmul.f32 %v1017, %v1016
  %v1019 = vmul.f32 0.5, %v1018
  %v1020 = vsub.f32 1.5, %v1019
  %v1021 = vmul.f32 %v1016, %v1020
  %vm1022 = vweird.f32 %v1014
  %vm1023 = vweird.f32 %v1016
  %vm1024 = vmor %vm1022, %vm1023
  %v1025 = vsel %vm1024, %v1016, %v1021
  %v1026 = vrsqrt.pop %v1015
  %v1027 = vmul.f32 %v1026, %v1015
  %v1028 = vmul.f32 %v1027, %v1026
  %v1029 = vmul.f32 0.5, %v1028
  %v1030 = vsub.f32 1.5, %v1029
  %v1031 = vmul.f32 %v1026, %v1030
  %vm1032 = vweird.f32 %v1015
  %vm1033 = vweird.f32 %v1026
  %vm1034 = vmor %vm1032, %vm1033
  %v1035 = vsel %vm1034, %v1026, %v1031
  %v1036 = vmul.f32 %v1002, %v1025
  %v1037 = vmul.f32 %v1003, %v1035
  %v1038 = vperm.slane %v956, 2
  %v1039 = vmul.f32 %v1036, %v1038
  %v1040 = vmul.f32 %v1037, %v1038
  %v1041 = vperm.slane %v956, 3
  %v1042 = vadd.f32 %v1039, %v1041
  %v1043 = vadd.f32 %v1040, %v1041
  %s1044 = scalar_lea.vmem %s5, 32
  %v1045 = vld [vmem:[%s1044] sm:$0xff]
  %v1046 = vld [vmem:[%s1044 + $0x8] sm:$0xff]
  %v1047 = vld [vmem:[%s1044 + $0x10] sm:$0xff]
  %v1048 = vld [vmem:[%s1044 + $0x18] sm:$0xff]
  %s1049 = scalar_lea.vmem %s6, 1
  %v1050 = vld [vmem:[%s1049] sm:$0x1]
  %v1052 = vperm.slane %v1050, 0
  %v1055 = vsel %vm50, %v1042, 0
  %v1058 = vsel %vm50, %v1043, 0
  %1060 = vmatpush.msra.mxu0 0.0
  %1061 = vmatpush.msra.mxu0 0.0
  %1062 = vmatpush.msra.mxu0 0.0
  %1063 = vmatpush.msra.mxu0 0.0
  %1064 = vmatpush.msra.mxu0 0.0
  %1065 = vmatpush.msra.mxu0 0.0
  %1066 = vmatpush.msra.mxu0 0.0
  %1067 = vmatpush.msra.mxu0 0.0
  %1068 = vmatpush.msra.mxu0 0.0
  %1069 = vmatpush.msra.mxu0 0.0
  %1070 = vmatpush.msra.mxu0 0.0
  %1071 = vmatpush.msra.mxu0 0.0
  %1072 = vmatpush.msra.mxu0 %v1048
  %1073 = vmatpush.msra.mxu0 %v1047
  %1074 = vmatpush.msra.mxu0 %v1046
  %1075 = vmatpush.msra.mxu0 %v1045
  %1076 = vmatmul.f32.gmra.mxu0 %v1055
  %v1077 = vpop.f32.mrf.mxu0
  %v1078 = vadd.f32 %v1052, %v1077
  %1079 = vmatmul.f32.gmra.mxu0 %v1058
  %v1080 = vpop.f32.mrf.mxu0
  %v1081 = vadd.f32 %v1052, %v1080
  %1082 = vdwg.mxu0
  %v1083 = vmul.f32 %v1078, 0.5
  %v1084 = vmul.f32 %v1081, 0.5
  %v1085 = vmul.f32 %v1078, 0.044715
  %v1086 = vmul.f32 %v1081, 0.044715
  %v1087 = vmul.f32 %v1085, %v1078
  %v1088 = vmul.f32 %v1086, %v1081
  %v1089 = vmul.f32 %v1087, %v1078
  %v1090 = vmul.f32 %v1088, %v1081
  %v1091 = vadd.f32 %v1078, %v1089
  %v1092 = vadd.f32 %v1081, %v1090
  %v1093 = vmul.f32 %v1091, 0.7978846
  %v1094 = vmul.f32 %v1092, 0.7978846
  %v1095 = vtanh.pop %v1093
  %v1096 = vtanh.pop %v1094
  %v1097 = vadd.f32 %v1095, 1.0
  %v1098 = vadd.f32 %v1096, 1.0
  %v1099 = vmul.f32 %v1083, %v1097
  %v1100 = vmul.f32 %v1084, %v1098
  %s1101 = scalar_lea.vmem %s7, 64
  %v1102 = vld [vmem:[%s1101] sm:$0xff]
  %v1103 = vld [vmem:[%s1101 + $0x8] sm:$0xff]
  %v1104 = vld [vmem:[%s1101 + $0x10] sm:$0xff]
  %v1105 = vld [vmem:[%s1101 + $0x18] sm:$0xff]
  %v1106 = vld [vmem:[%s1101 + $0x20] sm:$0xff]
  %v1107 = vld [vmem:[%s1101 + $0x28] sm:$0xff]
  %v1108 = vld [vmem:[%s1101 + $0x30] sm:$0xff]
  %v1109 = vld [vmem:[%s1101 + $0x38] sm:$0xff]
  %v1110 = vperm.slane %v956, 1
  %v1112 = vsel %vm566, %v1099, 0
  %v1115 = vsel %vm566, %v1100, 0
  %1117 = vmatpush.msra.mxu0 0.0
  %1118 = vmatpush.msra.mxu0 0.0
  %1119 = vmatpush.msra.mxu0 0.0
  %1120 = vmatpush.msra.mxu0 0.0
  %1121 = vmatpush.msra.mxu0 0.0
  %1122 = vmatpush.msra.mxu0 0.0
  %1123 = vmatpush.msra.mxu0 0.0
  %1124 = vmatpush.msra.mxu0 0.0
  %1125 = vmatpush.msra.mxu0 %v1109
  %1126 = vmatpush.msra.mxu0 %v1108
  %1127 = vmatpush.msra.mxu0 %v1107
  %1128 = vmatpush.msra.mxu0 %v1106
  %1129 = vmatpush.msra.mxu0 %v1105
  %1130 = vmatpush.msra.mxu0 %v1104
  %1131 = vmatpush.msra.mxu0 %v1103
  %1132 = vmatpush.msra.mxu0 %v1102
  %1133 = vmatmul.f32.gmra.mxu0 %v1112
  %v1134 = vpop.f32.mrf.mxu0
  %v1135 = vadd.f32 %v1110, %v1134
  %1136 = vmatmul.f32.gmra.mxu0 %v1115
  %v1137 = vpop.f32.mrf.mxu0
  %v1138 = vadd.f32 %v1110, %v1137
  %1139 = vdwg.mxu0
  %v1140 = vadd.f32 %v1042, %v1135
  %v1141 = vadd.f32 %v1043, %v1138
  %v1142 = vsel %vm50, %v1140, 0.0
  %1143 = vadd.xlane.f32.xlu0 %v1142
  %v1144 = vpop.xlane.xlu0 %1143
  %v1145 = vsel %vm50, %v1141, 0.0
  %1146 = vadd.xlane.f32.xlu0 %v1145
  %v1147 = vpop.xlane.xlu0 %1146
  %v1148 = vmul.f32 %v1144, %v63
  %v1149 = vmul.f32 %v1147, %v63
  %v1150 = vsub.f32 %v1140, %v1148
  %v1151 = vsub.f32 %v1141, %v1149
  %v1152 = vmul.f32 %v1150, %v1150
  %v1153 = vmul.f32 %v1151, %v1151
  %v1154 = vsel %vm50, %v1152, 0.0
  %1155 = vadd.xlane.f32.xlu0 %v1154
  %v1156 = vpop.xlane.xlu0 %1155
  %v1157 = vsel %vm50, %v1153, 0.0
  %1158 = vadd.xlane.f32.xlu0 %v1157
  %v1159 = vpop.xlane.xlu0 %1158
  %v1160 = vmul.f32 %v1156, %v63
  %v1161 = vmul.f32 %v1159, %v63
  %v1162 = vadd.f32 %v1160, 1e-12
  %v1163 = vadd.f32 %v1161, 1e-12
  %v1164 = vrsqrt.pop %v1162
  %v1165 = vmul.f32 %v1164, %v1162
  %v1166 = vmul.f32 %v1165, %v1164
  %v1167 = vmul.f32 0.5, %v1166
  %v1168 = vsub.f32 1.5, %v1167
  %v1169 = vmul.f32 %v1164, %v1168
  %vm1170 = vweird.f32 %v1162
  %vm1171 = vweird.f32 %v1164
  %vm1172 = vmor %vm1170, %vm1171
  %v1173 = vsel %vm1172, %v1164, %v1169
  %v1174 = vrsqrt.pop %v1163
  %v1175 = vmul.f32 %v1174, %v1163
  %v1176 = vmul.f32 %v1175, %v1174
  %v1177 = vmul.f32 0.5, %v1176
  %v1178 = vsub.f32 1.5, %v1177
  %v1179 = vmul.f32 %v1174, %v1178
  %vm1180 = vweird.f32 %v1163
  %vm1181 = vweird.f32 %v1174
  %vm1182 = vmor %vm1180, %vm1181
  %v1183 = vsel %vm1182, %v1174, %v1179
  %v1184 = vmul.f32 %v1150, %v1173
  %v1185 = vmul.f32 %v1151, %v1183
  %v1186 = vperm.slane %v956, 4
  %v1187 = vmul.f32 %v1184, %v1186
  %v1188 = vmul.f32 %v1185, %v1186
  %v1189 = vperm.slane %v956, 5
  %v1190 = vadd.f32 %v1187, %v1189
  %v1191 = vadd.f32 %v1188, %v1189
  %v1193 = vrot.slane %v1191, 7
  %vm1195 = vcmask 1040384
  %v1196 = vsel %vm1195, %v1190, %v1193
  %v1197 = vld [vmem:[%s9] sm:$0xff]
  %v1198 = vld [vmem:[%s9 + $0x8] sm:$0xff]
  %v1199 = vld [vmem:[%s9 + $0x10] sm:$0xff]
  %v1200 = vld [vmem:[%s9 + $0x18] sm:$0xff]
  %v1201 = vld [vmem:[%s10] sm:$0x1]
  %v1203 = vperm.slane %v1201, 0
  %v1206 = vsel %vm50, %v1196, 0
  %1208 = vmatpush.msra.mxu0 0.0
  %1209 = vmatpush.msra.mxu0 0.0
  %1210 = vmatpush.msra.mxu0 0.0
  %1211 = vmatpush.msra.mxu0 0.0
  %1212 = vmatpush.msra.mxu0 0.0
  %1213 = vmatpush.msra.mxu0 0.0
  %1214 = vmatpush.msra.mxu0 0.0
  %1215 = vmatpush.msra.mxu0 0.0
  %1216 = vmatpush.msra.mxu0 0.0
  %1217 = vmatpush.msra.mxu0 0.0
  %1218 = vmatpush.msra.mxu0 0.0
  %1219 = vmatpush.msra.mxu0 0.0
  %1220 = vmatpush.msra.mxu0 %v1200
  %1221 = vmatpush.msra.mxu0 %v1199
  %1222 = vmatpush.msra.mxu0 %v1198
  %1223 = vmatpush.msra.mxu0 %v1197
  %1224 = vmatmul.f32.gmra.mxu0 %v1206
  %v1225 = vpop.f32.mrf.mxu0
  %v1226 = vadd.f32 %v1203, %v1225
  %1227 = vdwg.mxu0
  %v1228 = vxor.u32 %v1226, 2147483648
  %v1229 = vmul.f32 %v1228, 1.442695
  %v1230 = vpow.pop %v1229
  %v1231 = vadd.f32 %v1230, 1.0
  %v1232 = vrcp.pop %v1231
  %v1233 = vmul.f32 %v1231, %v1232
  %v1234 = vsub.f32 1.0, %v1233
  %v1235 = vmul.f32 %v1232, %v1234
  %v1236 = vadd.f32 %v1232, %v1235
  %vm1237 = vweird.f32 %v1231
  %vm1238 = vweird.f32 %v1232
  %vm1239 = vmor %vm1237, %vm1238
  %v1240 = vsel %vm1239, %v1232, %v1236
  %v1241 = vand.u32 2147483647, %v1231
  %vm1242 = vcmp.eq.f32.partialorder %v1241, 8.507059e+37
  %v1243 = vand.u32 %v1231, 2147483648
  %v1244 = vor.u32 1.1754944e-38, %v1243
  %v1245 = vsel %vm1242, %v1244, %v1240
  %v1246 = vmul.f32 1.0, %v1245
  %v1247 = vtanh.pop %v1226
  %1249 = vrot.lane.b32.xlu0 %v1247, 112
  %v1250 = vpop.permute.xlu0 %1249
  %v1252 = vmul.f32 %v1246, %v1250
  %v1253 = vtanh.pop %v1252
  %1255 = vrot.lane.b32.xlu0 %v1253, 32
  %v1256 = vpop.permute.xlu0 %1255
  %v1258 = vmul.f32 %v1246, %v1256
  %1260 = vrot.lane.b32.xlu0 %v1258, 96
  %v1261 = vpop.permute.xlu0 %1260
  %1263 = vrot.lane.b32.xlu0 %v1258, 64
  %v1264 = vpop.permute.xlu0 %1263
  %v1266 = vsel %vm148, %v1261, %v1264
  %v1267 = vld [vmem:[%s11] sm:$0x1]
  %v1269 = vperm.slane %v1267, 0
  %v1271 = vmul.f32 %v1266, %v1269
  %vm1272 = vcmask 254976
  %v1273 = vsel %vm1272, %v1271, 0.0
  %1274 = vadd.xlane.f32.xlu0 %v1273
  %v1275 = vpop.xlane.xlu0 %1274
  %v1276 = vld [vmem:[#allocation2] sm:$0x1]
  %v1278 = vperm.slane %v1276, 0
  %v1280 = vadd.f32 %v1275, %v1278
  %vm1281 = vcmask 1024
  %1282 = vst.msk [vmem:[%s13] sm:$0x3] %vm1281, %v1280
  // Predicated region
  $region54: #{bert_for_mt_forward.1} parent=0 // pred_check
    _
  $region55: #{bert_for_mt_forward.1} parent=0 // pred_check_branch
    %1284 = sbr.rel (0) target = $region57
  $region56: #{bert_for_mt_forward.1} parent=0 // pred_region
    _
  $region57: #{bert_for_mt_forward.1} parent=0 // pred_fallthru
    _
  // Predicated region
  $region58: #{bert_for_mt_forward.1} parent=0 // pred_check
    _
  $region59: #{bert_for_mt_forward.1} parent=0 // pred_check_branch
    %1286 = sbr.rel (0) target = $region61
  $region60: #{bert_for_mt_forward.1} parent=0 // pred_region
    _
  $region61: #{bert_for_mt_forward.1} parent=0 // pred_fallthru
    _

</llo_original>
